<compile_context>
chip_gen: v7x
topology: tpu7x:2x2x1
jax: 0.10.0
libtpu: 0.0.40
codegen_flags: <defaults>
</compile_context>

<pallas_src>
import functools

import jax
import jax.numpy as jnp
from jax.experimental import pallas as pl
from jax.experimental.pallas import tpu as pltpu


HIDDEN = 512  # matches self.hidden_size = 512 in the PyTorch module


def _round_up(x, m):
    return ((x + m - 1) // m) * m


def _mlp_kernel(x_ref,
                w1_ref, b1_ref,
                w2_ref, b2_ref,
                w3_ref, b3_ref,
                w4_ref, b4_ref,
                o_ref):
    """Fused MLP: Linear->ReLU x3, then final Linear (logits).

    Matmuls run with bf16 inputs and f32 accumulation on the MXU; the bias
    add and ReLU stay in f32 on the VPU (hidden under MXU slack).
    """
    x = x_ref[...].astype(jnp.bfloat16)  # (TN, Dp)

    h = jnp.dot(x, w1_ref[...], preferred_element_type=jnp.float32) + b1_ref[...]
    h = jnp.maximum(h, 0.0).astype(jnp.bfloat16)

    h = jnp.dot(h, w2_ref[...], preferred_element_type=jnp.float32) + b2_ref[...]
    h = jnp.maximum(h, 0.0).astype(jnp.bfloat16)

    h = jnp.dot(h, w3_ref[...], preferred_element_type=jnp.float32) + b3_ref[...]
    h = jnp.maximum(h, 0.0).astype(jnp.bfloat16)

    logits = jnp.dot(h, w4_ref[...], preferred_element_type=jnp.float32) + b4_ref[...]
    o_ref[...] = logits.astype(o_ref.dtype)


@functools.partial(jax.jit, static_argnames=("batch_tile",))
def mlp_forward(x, params, *, batch_tile=256):
    """x: (N, D) float32 -> logits (N, C) float32."""
    w1, b1, w2, b2, w3, b3, w4, b4 = params
    n, d = x.shape
    hid = w1.shape[1]
    c = w4.shape[1]

    # Lane-align the feature and class dims (128 lanes).
    d_pad = _round_up(d, 128)
    c_pad = _round_up(c, 128)

    # Effective batch tile: big enough to fill the MXU, multiple of 16
    # (bf16 sublane packing), but shrunk for tiny batches and split so the
    # grid keeps >= 2 parallel steps when possible (v7x has 2 TensorCores).
    tile = int(min(batch_tile, _round_up(n, 16)))
    if tile > 16 and _round_up(n, tile) == tile:
        tile = _round_up(pl.cdiv(tile, 2), 16)
    n_pad = _round_up(n, tile)

    # Zero-pad activations / weights to the padded shapes (zeros contribute
    # nothing to the matmuls); cast weights to bf16 for the MXU.
    x_p = jnp.pad(x, ((0, n_pad - n), (0, d_pad - d)))
    w1_p = jnp.pad(w1, ((0, d_pad - d), (0, 0))).astype(jnp.bfloat16)
    w2_b = w2.astype(jnp.bfloat16)
    w3_b = w3.astype(jnp.bfloat16)
    w4_p = jnp.pad(w4, ((0, 0), (0, c_pad - c))).astype(jnp.bfloat16)
    b4_p = jnp.pad(b4, ((0, 0), (0, c_pad - c)))

    grid = (n_pad // tile,)

    flops = 2 * n_pad * (d_pad * hid + 2 * hid * hid + hid * c_pad)
    bytes_accessed = (
        x_p.size * 4 + n_pad * c_pad * 4                       # x in, logits out (f32)
        + 2 * (w1_p.size + w2_b.size + w3_b.size + w4_p.size)  # bf16 weights
        + 4 * (b1.size + b2.size + b3.size + b4_p.size)        # f32 biases
    )

    # Constant index map -> weights/biases stay VMEM-resident across the grid.
    full = lambda rows, cols: pl.BlockSpec((rows, cols), lambda i: (0, 0))

    out = pl.pallas_call(
        _mlp_kernel,
        out_shape=jax.ShapeDtypeStruct((n_pad, c_pad), jnp.float32),
        grid_spec=pltpu.PrefetchScalarGridSpec(
            num_scalar_prefetch=0,
            grid=grid,
            in_specs=[
                pl.BlockSpec((tile, d_pad), lambda i: (i, 0)),   # x tile
                full(d_pad, hid), full(1, hid),                  # layer 1
                full(hid, hid), full(1, hid),                    # layer 2
                full(hid, hid), full(1, hid),                    # layer 3
                full(hid, c_pad), full(1, c_pad),                # layer 4
            ],
            out_specs=pl.BlockSpec((tile, c_pad), lambda i: (i, 0)),
        ),
        compiler_params=pltpu.CompilerParams(
            dimension_semantics=("parallel",)),
        cost_estimate=pl.CostEstimate(
            flops=flops, transcendentals=0, bytes_accessed=bytes_accessed),
    )(x_p, w1_p, b1, w2_b, b2, w3_b, b3, w4_p, b4_p)

    return out[:n, :c]


def init_mlp_params(key, input_size, n_classes, hidden=HIDDEN):
    """Deterministic init mimicking PyTorch nn.Linear default:
    U(-1/sqrt(fan_in), 1/sqrt(fan_in)). Weights stored as (in, out)."""
    dims = [(input_size, hidden), (hidden, hidden), (hidden, hidden), (hidden, n_classes)]
    params = []
    for (fan_in, fan_out) in dims:
        key, kw, kb = jax.random.split(key, 3)
        bound = 1.0 / (fan_in ** 0.5)
        w = jax.random.uniform(kw, (fan_in, fan_out), jnp.float32, -bound, bound)
        b = jax.random.uniform(kb, (1, fan_out), jnp.float32, -bound, bound)
        params += [w, b]
    return tuple(params)


def mlp_reference(x, params):
    """Pure-JAX f32 reference for the same forward pass."""
    w1, b1, w2, b2, w3, b3, w4, b4 = params
    h = jnp.maximum(x @ w1 + b1, 0.0)
    h = jnp.maximum(h @ w2 + b2, 0.0)
    h = jnp.maximum(h @ w3 + b3, 0.0)
    return h @ w4 + b4


if __name__ == "__main__":
    key = jax.random.PRNGKey(0)
    batch, input_size, n_classes = 2, 32, 10

    kx, kp = jax.random.split(key)
    x = jax.random.normal(kx, (batch, input_size), jnp.float32)
    params = init_mlp_params(kp, input_size, n_classes)

    logits = mlp_forward(x, params)
    jax.block_until_ready(logits)

    ref = mlp_reference(x, params)
    assert logits.shape == (batch, n_classes), logits.shape
    # bf16 matmul inputs (f32 accumulation) -> slightly looser tolerance.
    assert jnp.allclose(logits, ref, atol=5e-2, rtol=5e-2), \
        f"max abs err {jnp.max(jnp.abs(logits - ref))}"

    print("KERNEL_OK")
</pallas_src>

<mosaic_0001>
module attributes {stable_mosaic.version = 11 : i64} {
  func.func @_mlp_kernel(%arg0: i32, %arg1: memref<16x128xf32, #tpu.memory_space<vmem>>, %arg2: memref<128x512xbf16, #tpu.memory_space<vmem>>, %arg3: memref<1x512xf32, #tpu.memory_space<vmem>>, %arg4: memref<512x512xbf16, #tpu.memory_space<vmem>>, %arg5: memref<1x512xf32, #tpu.memory_space<vmem>>, %arg6: memref<512x512xbf16, #tpu.memory_space<vmem>>, %arg7: memref<1x512xf32, #tpu.memory_space<vmem>>, %arg8: memref<512x128xbf16, #tpu.memory_space<vmem>>, %arg9: memref<1x128xf32, #tpu.memory_space<vmem>>, %arg10: memref<16x128xf32, #tpu.memory_space<vmem>>) attributes {dimension_semantics = [#tpu.dimension_semantics<parallel>], iteration_bounds = array<i64: 1>, scalar_prefetch = 0 : i64, scratch_operands = 0 : i64, tpu.core_type = #tpu.core_type<tc>, window_params = [{transform_indices = @transform_0, window_bounds = array<i64: 16, 128>}, {pipeline_mode = #tpu.pipeline_mode<synchronous>, transform_indices = @transform_1, window_bounds = array<i64: 128, 512>}, {pipeline_mode = #tpu.pipeline_mode<synchronous>, transform_indices = @transform_2, window_bounds = array<i64: 1, 512>}, {pipeline_mode = #tpu.pipeline_mode<synchronous>, transform_indices = @transform_3, window_bounds = array<i64: 512, 512>}, {pipeline_mode = #tpu.pipeline_mode<synchronous>, transform_indices = @transform_4, window_bounds = array<i64: 1, 512>}, {pipeline_mode = #tpu.pipeline_mode<synchronous>, transform_indices = @transform_5, window_bounds = array<i64: 512, 512>}, {pipeline_mode = #tpu.pipeline_mode<synchronous>, transform_indices = @transform_6, window_bounds = array<i64: 1, 512>}, {pipeline_mode = #tpu.pipeline_mode<synchronous>, transform_indices = @transform_7, window_bounds = array<i64: 512, 128>}, {pipeline_mode = #tpu.pipeline_mode<synchronous>, transform_indices = @transform_8, window_bounds = array<i64: 1, 128>}, {transform_indices = @transform_9, window_bounds = array<i64: 16, 128>}]} {
    %c0 = arith.constant 0 : index
    %c0_0 = arith.constant 0 : index
    %0 = vector.load %arg1[%c0, %c0_0] : memref<16x128xf32, #tpu.memory_space<vmem>>, vector<16x128xf32>
    %1 = arith.truncf %0 : vector<16x128xf32> to vector<16x128xbf16>
    %c0_1 = arith.constant 0 : index
    %c0_2 = arith.constant 0 : index
    %2 = vector.load %arg2[%c0_1, %c0_2] : memref<128x512xbf16, #tpu.memory_space<vmem>>, vector<128x512xbf16>
    %cst = arith.constant dense<0.000000e+00> : vector<16x512xf32>
    %3 = tpu.matmul %1, %2, %cst {dimension_numbers = #tpu.dot_dimension_numbers<[1], [0], [0], [1], [0, 0, 1, 1], [], []>} : vector<16x128xbf16>, vector<128x512xbf16>, vector<16x512xf32> -> vector<16x512xf32>
    %c0_3 = arith.constant 0 : index
    %c0_4 = arith.constant 0 : index
    %4 = vector.load %arg3[%c0_3, %c0_4] : memref<1x512xf32, #tpu.memory_space<vmem>>, vector<1x512xf32>
    %5 = vector.broadcast %4 : vector<1x512xf32> to vector<16x512xf32>
    %6 = arith.addf %3, %5 : vector<16x512xf32>
    %cst_5 = arith.constant 0.000000e+00 : f32
    %7 = vector.broadcast %cst_5 : f32 to vector<16x512xf32>
    %8 = arith.maximumf %6, %7 : vector<16x512xf32>
    %9 = arith.truncf %8 : vector<16x512xf32> to vector<16x512xbf16>
    %c0_6 = arith.constant 0 : index
    %c0_7 = arith.constant 0 : index
    %10 = vector.load %arg4[%c0_6, %c0_7] : memref<512x512xbf16, #tpu.memory_space<vmem>>, vector<512x512xbf16>
    %cst_8 = arith.constant dense<0.000000e+00> : vector<16x512xf32>
    %11 = tpu.matmul %9, %10, %cst_8 {dimension_numbers = #tpu.dot_dimension_numbers<[1], [0], [0], [1], [0, 0, 1, 1], [], []>} : vector<16x512xbf16>, vector<512x512xbf16>, vector<16x512xf32> -> vector<16x512xf32>
    %c0_9 = arith.constant 0 : index
    %c0_10 = arith.constant 0 : index
    %12 = vector.load %arg5[%c0_9, %c0_10] : memref<1x512xf32, #tpu.memory_space<vmem>>, vector<1x512xf32>
    %13 = vector.broadcast %12 : vector<1x512xf32> to vector<16x512xf32>
    %14 = arith.addf %11, %13 : vector<16x512xf32>
    %cst_11 = arith.constant 0.000000e+00 : f32
    %15 = vector.broadcast %cst_11 : f32 to vector<16x512xf32>
    %16 = arith.maximumf %14, %15 : vector<16x512xf32>
    %17 = arith.truncf %16 : vector<16x512xf32> to vector<16x512xbf16>
    %c0_12 = arith.constant 0 : index
    %c0_13 = arith.constant 0 : index
    %18 = vector.load %arg6[%c0_12, %c0_13] : memref<512x512xbf16, #tpu.memory_space<vmem>>, vector<512x512xbf16>
    %cst_14 = arith.constant dense<0.000000e+00> : vector<16x512xf32>
    %19 = tpu.matmul %17, %18, %cst_14 {dimension_numbers = #tpu.dot_dimension_numbers<[1], [0], [0], [1], [0, 0, 1, 1], [], []>} : vector<16x512xbf16>, vector<512x512xbf16>, vector<16x512xf32> -> vector<16x512xf32>
    %c0_15 = arith.constant 0 : index
    %c0_16 = arith.constant 0 : index
    %20 = vector.load %arg7[%c0_15, %c0_16] : memref<1x512xf32, #tpu.memory_space<vmem>>, vector<1x512xf32>
    %21 = vector.broadcast %20 : vector<1x512xf32> to vector<16x512xf32>
    %22 = arith.addf %19, %21 : vector<16x512xf32>
    %cst_17 = arith.constant 0.000000e+00 : f32
    %23 = vector.broadcast %cst_17 : f32 to vector<16x512xf32>
    %24 = arith.maximumf %22, %23 : vector<16x512xf32>
    %25 = arith.truncf %24 : vector<16x512xf32> to vector<16x512xbf16>
    %c0_18 = arith.constant 0 : index
    %c0_19 = arith.constant 0 : index
    %26 = vector.load %arg8[%c0_18, %c0_19] : memref<512x128xbf16, #tpu.memory_space<vmem>>, vector<512x128xbf16>
    %cst_20 = arith.constant dense<0.000000e+00> : vector<16x128xf32>
    %27 = tpu.matmul %25, %26, %cst_20 {dimension_numbers = #tpu.dot_dimension_numbers<[1], [0], [0], [1], [0, 0, 1, 1], [], []>} : vector<16x512xbf16>, vector<512x128xbf16>, vector<16x128xf32> -> vector<16x128xf32>
    %c0_21 = arith.constant 0 : index
    %c0_22 = arith.constant 0 : index
    %28 = vector.load %arg9[%c0_21, %c0_22] : memref<1x128xf32, #tpu.memory_space<vmem>>, vector<1x128xf32>
    %29 = vector.broadcast %28 : vector<1x128xf32> to vector<16x128xf32>
    %30 = arith.addf %27, %29 : vector<16x128xf32>
    %c0_23 = arith.constant 0 : index
    %c0_24 = arith.constant 0 : index
    %31 = vector.load %arg10[%c0_23, %c0_24] : memref<16x128xf32, #tpu.memory_space<vmem>>, vector<16x128xf32>
    tpu.vector_store %arg10[%c0_23, %c0_24], %30 {strides = array<i32>} : memref<16x128xf32, #tpu.memory_space<vmem>>, vector<16x128xf32>,
    return
  }
  func.func @transform_0(%arg0: i32) -> (i32, i32) {
    %c0_i32 = arith.constant 0 : i32
    %c0_i32_0 = arith.constant 0 : i32
    return %arg0, %c0_i32 : i32, i32
  }
  func.func @transform_1(%arg0: i32) -> (i32, i32) {
    %c0_i32 = arith.constant 0 : i32
    %c0_i32_0 = arith.constant 0 : i32
    %c0_i32_1 = arith.constant 0 : i32
    return %c0_i32, %c0_i32_0 : i32, i32
  }
  func.func @transform_2(%arg0: i32) -> (i32, i32) {
    %c0_i32 = arith.constant 0 : i32
    %c0_i32_0 = arith.constant 0 : i32
    %c0_i32_1 = arith.constant 0 : i32
    return %c0_i32, %c0_i32_0 : i32, i32
  }
  func.func @transform_3(%arg0: i32) -> (i32, i32) {
    %c0_i32 = arith.constant 0 : i32
    %c0_i32_0 = arith.constant 0 : i32
    %c0_i32_1 = arith.constant 0 : i32
    return %c0_i32, %c0_i32_0 : i32, i32
  }
  func.func @transform_4(%arg0: i32) -> (i32, i32) {
    %c0_i32 = arith.constant 0 : i32
    %c0_i32_0 = arith.constant 0 : i32
    %c0_i32_1 = arith.constant 0 : i32
    return %c0_i32, %c0_i32_0 : i32, i32
  }
  func.func @transform_5(%arg0: i32) -> (i32, i32) {
    %c0_i32 = arith.constant 0 : i32
    %c0_i32_0 = arith.constant 0 : i32
    %c0_i32_1 = arith.constant 0 : i32
    return %c0_i32, %c0_i32_0 : i32, i32
  }
  func.func @transform_6(%arg0: i32) -> (i32, i32) {
    %c0_i32 = arith.constant 0 : i32
    %c0_i32_0 = arith.constant 0 : i32
    %c0_i32_1 = arith.constant 0 : i32
    return %c0_i32, %c0_i32_0 : i32, i32
  }
  func.func @transform_7(%arg0: i32) -> (i32, i32) {
    %c0_i32 = arith.constant 0 : i32
    %c0_i32_0 = arith.constant 0 : i32
    %c0_i32_1 = arith.constant 0 : i32
    return %c0_i32, %c0_i32_0 : i32, i32
  }
  func.func @transform_8(%arg0: i32) -> (i32, i32) {
    %c0_i32 = arith.constant 0 : i32
    %c0_i32_0 = arith.constant 0 : i32
    %c0_i32_1 = arith.constant 0 : i32
    return %c0_i32, %c0_i32_0 : i32, i32
  }
  func.func @transform_9(%arg0: i32) -> (i32, i32) {
    %c0_i32 = arith.constant 0 : i32
    %c0_i32_0 = arith.constant 0 : i32
    return %arg0, %c0_i32 : i32, i32
  }
}

</mosaic_0001>

<llo_original>
// kernel: mlp_forward.1
$region0: #{mlp_forward.1}
  #allocation0 [shape = 'u32[]', space=smem, size = 0x4, offset = 0x4, fixed_abs, tag = 'smem constant byte address 0x4 - core index']
  #allocation1 [shape = 'u32[144,128]{1,0:T(1,128)}', space=vmem, size = 0x12000, scoped, tag = 'internal scratch']
  %s0 = inlined_call_operand.vmem [shape: f32[16,128], index: 0, kind: input, shape index: {}]
  %s1 = inlined_call_operand.vmem [shape: bf16[128,512], index: 1, kind: input, shape index: {}]
  %s2 = inlined_call_operand.vmem [shape: f32[1,512], index: 2, kind: input, shape index: {}]
  %s3 = inlined_call_operand.vmem [shape: bf16[512,512], index: 3, kind: input, shape index: {}]
  %s4 = inlined_call_operand.vmem [shape: f32[1,512], index: 4, kind: input, shape index: {}]
  %s5 = inlined_call_operand.vmem [shape: bf16[512,512], index: 5, kind: input, shape index: {}]
  %s6 = inlined_call_operand.vmem [shape: f32[1,512], index: 6, kind: input, shape index: {}]
  %s7 = inlined_call_operand.vmem [shape: bf16[512,128], index: 7, kind: input, shape index: {}]
  %s8 = inlined_call_operand.vmem [shape: f32[1,128], index: 8, kind: input, shape index: {}]
  %s9 = inlined_call_operand.vmem [shape: f32[16,128], index: 9, kind: output, shape index: {}]
  %s10 = sld [smem:[#allocation0]]
  $region46: #{mlp_forward.1} parent=0
    _
  %s12 = ssub.s32 1, %s10
  %s13 = scalar_select 0, %s12, %s10
  // Predicated region
  $region2: #{mlp_forward.1} parent=0 // pred_check
    _
  $region3: #{mlp_forward.1} parent=0 // pred_check_branch
    %15 = sbr.rel (0) target = $region5
  $region4: #{mlp_forward.1} parent=0 // pred_region
    _
  $region5: #{mlp_forward.1} parent=0 // pred_fallthru
    _
  // Predicated region
  $region6: #{mlp_forward.1} parent=0 // pred_check
    _
  $region7: #{mlp_forward.1} parent=0 // pred_check_branch
    %17 = sbr.rel (0) target = $region9
  $region8: #{mlp_forward.1} parent=0 // pred_region
    _
  $region9: #{mlp_forward.1} parent=0 // pred_fallthru
    _
  // Predicated region
  $region10: #{mlp_forward.1} parent=0 // pred_check
    _
  $region11: #{mlp_forward.1} parent=0 // pred_check_branch
    %19 = sbr.rel (0) target = $region13
  $region12: #{mlp_forward.1} parent=0 // pred_region
    _
  $region13: #{mlp_forward.1} parent=0 // pred_fallthru
    _
  // Predicated region
  $region14: #{mlp_forward.1} parent=0 // pred_check
    _
  $region15: #{mlp_forward.1} parent=0 // pred_check_branch
    %21 = sbr.rel (0) target = $region17
  $region16: #{mlp_forward.1} parent=0 // pred_region
    _
  $region17: #{mlp_forward.1} parent=0 // pred_fallthru
    _
  // Predicated region
  $region18: #{mlp_forward.1} parent=0 // pred_check
    _
  $region19: #{mlp_forward.1} parent=0 // pred_check_branch
    %23 = sbr.rel (0) target = $region21
  $region20: #{mlp_forward.1} parent=0 // pred_region
    _
  $region21: #{mlp_forward.1} parent=0 // pred_fallthru
    _
  // Predicated region
  $region22: #{mlp_forward.1} parent=0 // pred_check
    _
  $region23: #{mlp_forward.1} parent=0 // pred_check_branch
    %25 = sbr.rel (0) target = $region25
  $region24: #{mlp_forward.1} parent=0 // pred_region
    _
  $region25: #{mlp_forward.1} parent=0 // pred_fallthru
    _
  // Predicated region
  $region26: #{mlp_forward.1} parent=0 // pred_check
    _
  $region27: #{mlp_forward.1} parent=0 // pred_check_branch
    %27 = sbr.rel (0) target = $region29
  $region28: #{mlp_forward.1} parent=0 // pred_region
    _
  $region29: #{mlp_forward.1} parent=0 // pred_fallthru
    _
  // Predicated region
  $region30: #{mlp_forward.1} parent=0 // pred_check
    _
  $region31: #{mlp_forward.1} parent=0 // pred_check_branch
    %29 = sbr.rel (0) target = $region33
  $region32: #{mlp_forward.1} parent=0 // pred_region
    _
  $region33: #{mlp_forward.1} parent=0 // pred_fallthru
    _
  // Predicated region
  $region34: #{mlp_forward.1} parent=0 // pred_check
    _
  $region35: #{mlp_forward.1} parent=0 // pred_check_branch
    %31 = sbr.rel (0) target = $region37
  $region36: #{mlp_forward.1} parent=0 // pred_region
    _
  $region37: #{mlp_forward.1} parent=0 // pred_fallthru
    _
  %v33 = vld [vmem:[%s0] sm:$0xff]
  %v34 = vld [vmem:[%s0 + $0x8] sm:$0xff]
  %v35 = vpack.c.bf16 %v34, %v33
  %v36 = vld [vmem:[%s1] sm:$0xff]
  %v37 = vld [vmem:[%s1 + $0x8] sm:$0xff]
  %v38 = vld [vmem:[%s1 + $0x10] sm:$0xff]
  %v39 = vld [vmem:[%s1 + $0x18] sm:$0xff]
  %v40 = vld [vmem:[%s1 + $0x20] sm:$0xff]
  %v41 = vld [vmem:[%s1 + $0x28] sm:$0xff]
  %v42 = vld [vmem:[%s1 + $0x30] sm:$0xff]
  %v43 = vld [vmem:[%s1 + $0x38] sm:$0xff]
  %v44 = vld [vmem:[%s1 + $0x40] sm:$0xff]
  %v45 = vld [vmem:[%s1 + $0x48] sm:$0xff]
  %v46 = vld [vmem:[%s1 + $0x50] sm:$0xff]
  %v47 = vld [vmem:[%s1 + $0x58] sm:$0xff]
  %v48 = vld [vmem:[%s1 + $0x60] sm:$0xff]
  %v49 = vld [vmem:[%s1 + $0x68] sm:$0xff]
  %v50 = vld [vmem:[%s1 + $0x70] sm:$0xff]
  %v51 = vld [vmem:[%s1 + $0x78] sm:$0xff]
  %v52 = vld [vmem:[%s1 + $0x80] sm:$0xff]
  %v53 = vld [vmem:[%s1 + $0x88] sm:$0xff]
  %v54 = vld [vmem:[%s1 + $0x90] sm:$0xff]
  %v55 = vld [vmem:[%s1 + $0x98] sm:$0xff]
  %v56 = vld [vmem:[%s1 + $0xa0] sm:$0xff]
  %v57 = vld [vmem:[%s1 + $0xa8] sm:$0xff]
  %v58 = vld [vmem:[%s1 + $0xb0] sm:$0xff]
  %v59 = vld [vmem:[%s1 + $0xb8] sm:$0xff]
  %v60 = vld [vmem:[%s1 + $0xc0] sm:$0xff]
  %v61 = vld [vmem:[%s1 + $0xc8] sm:$0xff]
  %v62 = vld [vmem:[%s1 + $0xd0] sm:$0xff]
  %v63 = vld [vmem:[%s1 + $0xd8] sm:$0xff]
  %v64 = vld [vmem:[%s1 + $0xe0] sm:$0xff]
  %v65 = vld [vmem:[%s1 + $0xe8] sm:$0xff]
  %v66 = vld [vmem:[%s1 + $0xf0] sm:$0xff]
  %v67 = vld [vmem:[%s1 + $0xf8] sm:$0xff]
  %v68 = vld [vmem:[%s2] sm:$0xf]
  %v70 = vlaneseq
  %v71 = vshrl.u32 %v70, 7
  %v72 = vsub.s32 0, %v71
  %v73 = vrot.slane %v68, %v72
  %v74 = vlaneseq
  %v75 = vshrl.u32 %v74, 7
  %v76 = vsub.s32 1, %v75
  %v77 = vrot.slane %v68, %v76
  %v78 = vlaneseq
  %v79 = vshrl.u32 %v78, 7
  %v80 = vsub.s32 2, %v79
  %v81 = vrot.slane %v68, %v80
  %v82 = vlaneseq
  %v83 = vshrl.u32 %v82, 7
  %v84 = vsub.s32 3, %v83
  %v85 = vrot.slane %v68, %v84
  %v122 = vunpack.c.l.b16 %v36
  %v123 = vunpack.c.h.b16 %v36
  %v124 = vunpack.c.l.b16 %v37
  %v125 = vunpack.c.h.b16 %v37
  %v126 = vunpack.c.l.b16 %v38
  %v127 = vunpack.c.h.b16 %v38
  %v128 = vunpack.c.l.b16 %v39
  %v129 = vunpack.c.h.b16 %v39
  %v130 = vunpack.c.l.b16 %v40
  %v131 = vunpack.c.h.b16 %v40
  %v132 = vunpack.c.l.b16 %v41
  %v133 = vunpack.c.h.b16 %v41
  %v134 = vunpack.c.l.b16 %v42
  %v135 = vunpack.c.h.b16 %v42
  %v136 = vunpack.c.l.b16 %v43
  %v137 = vunpack.c.h.b16 %v43
  %v138 = vunpack.c.l.b16 %v44
  %v139 = vunpack.c.h.b16 %v44
  %v140 = vunpack.c.l.b16 %v45
  %v141 = vunpack.c.h.b16 %v45
  %v142 = vunpack.c.l.b16 %v46
  %v143 = vunpack.c.h.b16 %v46
  %v144 = vunpack.c.l.b16 %v47
  %v145 = vunpack.c.h.b16 %v47
  %v146 = vunpack.c.l.b16 %v48
  %v147 = vunpack.c.h.b16 %v48
  %v148 = vunpack.c.l.b16 %v49
  %v149 = vunpack.c.h.b16 %v49
  %v150 = vunpack.c.l.b16 %v50
  %v151 = vunpack.c.h.b16 %v50
  %v152 = vunpack.c.l.b16 %v51
  %v153 = vunpack.c.h.b16 %v51
  %v154 = vunpack.c.l.b16 %v52
  %v155 = vunpack.c.h.b16 %v52
  %v156 = vunpack.c.l.b16 %v53
  %v157 = vunpack.c.h.b16 %v53
  %v158 = vunpack.c.l.b16 %v54
  %v159 = vunpack.c.h.b16 %v54
  %v160 = vunpack.c.l.b16 %v55
  %v161 = vunpack.c.h.b16 %v55
  %v162 = vunpack.c.l.b16 %v56
  %v163 = vunpack.c.h.b16 %v56
  %v164 = vunpack.c.l.b16 %v57
  %v165 = vunpack.c.h.b16 %v57
  %v166 = vunpack.c.l.b16 %v58
  %v167 = vunpack.c.h.b16 %v58
  %v168 = vunpack.c.l.b16 %v59
  %v169 = vunpack.c.h.b16 %v59
  %v170 = vunpack.c.l.b16 %v60
  %v171 = vunpack.c.h.b16 %v60
  %v172 = vunpack.c.l.b16 %v61
  %v173 = vunpack.c.h.b16 %v61
  %v174 = vunpack.c.l.b16 %v62
  %v175 = vunpack.c.h.b16 %v62
  %v176 = vunpack.c.l.b16 %v63
  %v177 = vunpack.c.h.b16 %v63
  %v178 = vunpack.c.l.b16 %v64
  %v179 = vunpack.c.h.b16 %v64
  %v180 = vunpack.c.l.b16 %v65
  %v181 = vunpack.c.h.b16 %v65
  %v182 = vunpack.c.l.b16 %v66
  %v183 = vunpack.c.h.b16 %v66
  %v184 = vunpack.c.l.b16 %v67
  %v185 = vunpack.c.h.b16 %v67
  %v186 = vpack.c.b16 %v126, %v122
  %v187 = vpack.c.b16 %v127, %v123
  %v188 = vpack.c.b16 %v128, %v124
  %v189 = vpack.c.b16 %v129, %v125
  %v190 = vpack.c.b16 %v134, %v130
  %v191 = vpack.c.b16 %v135, %v131
  %v192 = vpack.c.b16 %v136, %v132
  %v193 = vpack.c.b16 %v137, %v133
  %v194 = vpack.c.b16 %v142, %v138
  %v195 = vpack.c.b16 %v143, %v139
  %v196 = vpack.c.b16 %v144, %v140
  %v197 = vpack.c.b16 %v145, %v141
  %v198 = vpack.c.b16 %v150, %v146
  %v199 = vpack.c.b16 %v151, %v147
  %v200 = vpack.c.b16 %v152, %v148
  %v201 = vpack.c.b16 %v153, %v149
  %v202 = vpack.c.b16 %v158, %v154
  %v203 = vpack.c.b16 %v159, %v155
  %v204 = vpack.c.b16 %v160, %v156
  %v205 = vpack.c.b16 %v161, %v157
  %v206 = vpack.c.b16 %v166, %v162
  %v207 = vpack.c.b16 %v167, %v163
  %v208 = vpack.c.b16 %v168, %v164
  %v209 = vpack.c.b16 %v169, %v165
  %v210 = vpack.c.b16 %v174, %v170
  %v211 = vpack.c.b16 %v175, %v171
  %v212 = vpack.c.b16 %v176, %v172
  %v213 = vpack.c.b16 %v177, %v173
  %v214 = vpack.c.b16 %v182, %v178
  %v215 = vpack.c.b16 %v183, %v179
  %v216 = vpack.c.b16 %v184, %v180
  %v217 = vpack.c.b16 %v185, %v181
  %250 = vmatprep.subr.bf16.mxu0 %v187
  %251 = vmatpush1.bf16.msra.mxu0 %v186
  %252 = vmatprep.subr.bf16.mxu0 %v191
  %253 = vmatpush1.bf16.msra.mxu0 %v190
  %254 = vmatprep.subr.bf16.mxu0 %v195
  %255 = vmatpush1.bf16.msra.mxu0 %v194
  %256 = vmatprep.subr.bf16.mxu0 %v199
  %257 = vmatpush1.bf16.msra.mxu0 %v198
  %258 = vmatprep.subr.bf16.mxu0 %v203
  %259 = vmatpush1.bf16.msra.mxu0 %v202
  %260 = vmatprep.subr.bf16.mxu0 %v207
  %261 = vmatpush1.bf16.msra.mxu0 %v206
  %262 = vmatprep.subr.bf16.mxu0 %v211
  %263 = vmatpush1.bf16.msra.mxu0 %v210
  %264 = vmatprep.subr.bf16.mxu0 %v215
  %265 = vmatpush1.bf16.msra.mxu0 %v214
  %266 = vmatprep.subr.bf16.mxu0 0
  %267 = vmatpush1.bf16.msra.mxu0 0
  %268 = vmatprep.subr.bf16.mxu0 0
  %269 = vmatpush1.bf16.msra.mxu0 0
  %270 = vmatprep.subr.bf16.mxu0 0
  %271 = vmatpush1.bf16.msra.mxu0 0
  %272 = vmatprep.subr.bf16.mxu0 0
  %273 = vmatpush1.bf16.msra.mxu0 0
  %274 = vmatprep.subr.bf16.mxu0 0
  %275 = vmatpush1.bf16.msra.mxu0 0
  %276 = vmatprep.subr.bf16.mxu0 0
  %277 = vmatpush1.bf16.msra.mxu0 0
  %278 = vmatprep.subr.bf16.mxu0 0
  %279 = vmatpush1.bf16.msra.mxu0 0
  %280 = vmatprep.subr.bf16.mxu0 0
  %281 = vmatpush1.bf16.msra.mxu0 0
  %282 = vmatprep.mubr.bf16.mxu0 0
  %283 = vmatmul.mubr.bf16.gmra.mrb[0].mxu0 %v35
  %v284 = vpop.f32.mrb[0].mxu0
  %v285 = vadd.f32 %v73, %v284
  %v286 = vpop.f32.mrb[0].mxu0
  %v287 = vadd.f32 %v77, %v286
  %v288 = vpop.f32.mrb[0].mxu0
  %v289 = vadd.f32 %v73, %v288
  %v290 = vpop.f32.mrb[0].mxu0
  %v291 = vadd.f32 %v77, %v290
  %292 = vdwg.mxu0
  %293 = vmatprep.subr.bf16.mxu0 %v189
  %294 = vmatpush1.bf16.msra.mxu0 %v188
  %295 = vmatprep.subr.bf16.mxu0 %v193
  %296 = vmatpush1.bf16.msra.mxu0 %v192
  %297 = vmatprep.subr.bf16.mxu0 %v197
  %298 = vmatpush1.bf16.msra.mxu0 %v196
  %299 = vmatprep.subr.bf16.mxu0 %v201
  %300 = vmatpush1.bf16.msra.mxu0 %v200
  %301 = vmatprep.subr.bf16.mxu0 %v205
  %302 = vmatpush1.bf16.msra.mxu0 %v204
  %303 = vmatprep.subr.bf16.mxu0 %v209
  %304 = vmatpush1.bf16.msra.mxu0 %v208
  %305 = vmatprep.subr.bf16.mxu0 %v213
  %306 = vmatpush1.bf16.msra.mxu0 %v212
  %307 = vmatprep.subr.bf16.mxu0 %v217
  %308 = vmatpush1.bf16.msra.mxu0 %v216
  %309 = vmatprep.subr.bf16.mxu0 0
  %310 = vmatpush1.bf16.msra.mxu0 0
  %311 = vmatprep.subr.bf16.mxu0 0
  %312 = vmatpush1.bf16.msra.mxu0 0
  %313 = vmatprep.subr.bf16.mxu0 0
  %314 = vmatpush1.bf16.msra.mxu0 0
  %315 = vmatprep.subr.bf16.mxu0 0
  %316 = vmatpush1.bf16.msra.mxu0 0
  %317 = vmatprep.subr.bf16.mxu0 0
  %318 = vmatpush1.bf16.msra.mxu0 0
  %319 = vmatprep.subr.bf16.mxu0 0
  %320 = vmatpush1.bf16.msra.mxu0 0
  %321 = vmatprep.subr.bf16.mxu0 0
  %322 = vmatpush1.bf16.msra.mxu0 0
  %323 = vmatprep.subr.bf16.mxu0 0
  %324 = vmatpush1.bf16.msra.mxu0 0
  %325 = vmatprep.mubr.bf16.mxu0 0
  %326 = vmatmul.mubr.bf16.gmra.mrb[0].mxu0 %v35
  %v327 = vpop.f32.mrb[0].mxu0
  %v328 = vadd.f32 %v81, %v327
  %v329 = vpop.f32.mrb[0].mxu0
  %v330 = vadd.f32 %v85, %v329
  %v331 = vpop.f32.mrb[0].mxu0
  %v332 = vadd.f32 %v81, %v331
  %v333 = vpop.f32.mrb[0].mxu0
  %v334 = vadd.f32 %v85, %v333
  %335 = vdwg.mxu0
  %v336 = vmax.f32 %v285, 0.0
  %v337 = vmax.f32 %v287, 0.0
  %v338 = vmax.f32 %v328, 0.0
  %v339 = vmax.f32 %v330, 0.0
  %v340 = vmax.f32 %v289, 0.0
  %v341 = vmax.f32 %v291, 0.0
  %v342 = vmax.f32 %v332, 0.0
  %v343 = vmax.f32 %v334, 0.0
  %v344 = vpack.c.bf16 %v340, %v336
  %v345 = vpack.c.bf16 %v341, %v337
  %v346 = vpack.c.bf16 %v342, %v338
  %v347 = vpack.c.bf16 %v343, %v339
  %v348 = vld [vmem:[%s3] sm:$0xff]
  %v349 = vld [vmem:[%s3 + $0x8] sm:$0xff]
  %v350 = vld [vmem:[%s3 + $0x10] sm:$0xff]
  %v351 = vld [vmem:[%s3 + $0x18] sm:$0xff]
  %v352 = vld [vmem:[%s3 + $0x20] sm:$0xff]
  %v353 = vld [vmem:[%s3 + $0x28] sm:$0xff]
  %v354 = vld [vmem:[%s3 + $0x30] sm:$0xff]
  %v355 = vld [vmem:[%s3 + $0x38] sm:$0xff]
  %v356 = vld [vmem:[%s3 + $0x40] sm:$0xff]
  %v357 = vld [vmem:[%s3 + $0x48] sm:$0xff]
  %v358 = vld [vmem:[%s3 + $0x50] sm:$0xff]
  %v359 = vld [vmem:[%s3 + $0x58] sm:$0xff]
  %v360 = vld [vmem:[%s3 + $0x60] sm:$0xff]
  %v361 = vld [vmem:[%s3 + $0x68] sm:$0xff]
  %v362 = vld [vmem:[%s3 + $0x70] sm:$0xff]
  %v363 = vld [vmem:[%s3 + $0x78] sm:$0xff]
  %v364 = vld [vmem:[%s3 + $0x80] sm:$0xff]
  %v365 = vld [vmem:[%s3 + $0x88] sm:$0xff]
  %v366 = vld [vmem:[%s3 + $0x90] sm:$0xff]
  %v367 = vld [vmem:[%s3 + $0x98] sm:$0xff]
  %v368 = vld [vmem:[%s3 + $0xa0] sm:$0xff]
  %v369 = vld [vmem:[%s3 + $0xa8] sm:$0xff]
  %v370 = vld [vmem:[%s3 + $0xb0] sm:$0xff]
  %v371 = vld [vmem:[%s3 + $0xb8] sm:$0xff]
  %v372 = vld [vmem:[%s3 + $0xc0] sm:$0xff]
  %v373 = vld [vmem:[%s3 + $0xc8] sm:$0xff]
  %v374 = vld [vmem:[%s3 + $0xd0] sm:$0xff]
  %v375 = vld [vmem:[%s3 + $0xd8] sm:$0xff]
  %v376 = vld [vmem:[%s3 + $0xe0] sm:$0xff]
  %v377 = vld [vmem:[%s3 + $0xe8] sm:$0xff]
  %v378 = vld [vmem:[%s3 + $0xf0] sm:$0xff]
  %v379 = vld [vmem:[%s3 + $0xf8] sm:$0xff]
  %v380 = vld [vmem:[%s3 + $0x100] sm:$0xff]
  %v381 = vld [vmem:[%s3 + $0x108] sm:$0xff]
  %v382 = vld [vmem:[%s3 + $0x110] sm:$0xff]
  %v383 = vld [vmem:[%s3 + $0x118] sm:$0xff]
  %v384 = vld [vmem:[%s3 + $0x120] sm:$0xff]
  %v385 = vld [vmem:[%s3 + $0x128] sm:$0xff]
  %v386 = vld [vmem:[%s3 + $0x130] sm:$0xff]
  %v387 = vld [vmem:[%s3 + $0x138] sm:$0xff]
  %v388 = vld [vmem:[%s3 + $0x140] sm:$0xff]
  %v389 = vld [vmem:[%s3 + $0x148] sm:$0xff]
  %v390 = vld [vmem:[%s3 + $0x150] sm:$0xff]
  %v391 = vld [vmem:[%s3 + $0x158] sm:$0xff]
  %v392 = vld [vmem:[%s3 + $0x160] sm:$0xff]
  %v393 = vld [vmem:[%s3 + $0x168] sm:$0xff]
  %v394 = vld [vmem:[%s3 + $0x170] sm:$0xff]
  %v395 = vld [vmem:[%s3 + $0x178] sm:$0xff]
  %v396 = vld [vmem:[%s3 + $0x180] sm:$0xff]
  %v397 = vld [vmem:[%s3 + $0x188] sm:$0xff]
  %v398 = vld [vmem:[%s3 + $0x190] sm:$0xff]
  %v399 = vld [vmem:[%s3 + $0x198] sm:$0xff]
  %v400 = vld [vmem:[%s3 + $0x1a0] sm:$0xff]
  %v401 = vld [vmem:[%s3 + $0x1a8] sm:$0xff]
  %v402 = vld [vmem:[%s3 + $0x1b0] sm:$0xff]
  %v403 = vld [vmem:[%s3 + $0x1b8] sm:$0xff]
  %v404 = vld [vmem:[%s3 + $0x1c0] sm:$0xff]
  %v405 = vld [vmem:[%s3 + $0x1c8] sm:$0xff]
  %v406 = vld [vmem:[%s3 + $0x1d0] sm:$0xff]
  %v407 = vld [vmem:[%s3 + $0x1d8] sm:$0xff]
  %v408 = vld [vmem:[%s3 + $0x1e0] sm:$0xff]
  %v409 = vld [vmem:[%s3 + $0x1e8] sm:$0xff]
  %v410 = vld [vmem:[%s3 + $0x1f0] sm:$0xff]
  %v411 = vld [vmem:[%s3 + $0x1f8] sm:$0xff]
  %v412 = vld [vmem:[%s3 + $0x200] sm:$0xff]
  %v413 = vld [vmem:[%s3 + $0x208] sm:$0xff]
  %v414 = vld [vmem:[%s3 + $0x210] sm:$0xff]
  %v415 = vld [vmem:[%s3 + $0x218] sm:$0xff]
  %v416 = vld [vmem:[%s3 + $0x220] sm:$0xff]
  %v417 = vld [vmem:[%s3 + $0x228] sm:$0xff]
  %v418 = vld [vmem:[%s3 + $0x230] sm:$0xff]
  %v419 = vld [vmem:[%s3 + $0x238] sm:$0xff]
  %v420 = vld [vmem:[%s3 + $0x240] sm:$0xff]
  %v421 = vld [vmem:[%s3 + $0x248] sm:$0xff]
  %v422 = vld [vmem:[%s3 + $0x250] sm:$0xff]
  %v423 = vld [vmem:[%s3 + $0x258] sm:$0xff]
  %v424 = vld [vmem:[%s3 + $0x260] sm:$0xff]
  %v425 = vld [vmem:[%s3 + $0x268] sm:$0xff]
  %v426 = vld [vmem:[%s3 + $0x270] sm:$0xff]
  %v427 = vld [vmem:[%s3 + $0x278] sm:$0xff]
  %v428 = vld [vmem:[%s3 + $0x280] sm:$0xff]
  %v429 = vld [vmem:[%s3 + $0x288] sm:$0xff]
  %v430 = vld [vmem:[%s3 + $0x290] sm:$0xff]
  %v431 = vld [vmem:[%s3 + $0x298] sm:$0xff]
  %v432 = vld [vmem:[%s3 + $0x2a0] sm:$0xff]
  %v433 = vld [vmem:[%s3 + $0x2a8] sm:$0xff]
  %v434 = vld [vmem:[%s3 + $0x2b0] sm:$0xff]
  %v435 = vld [vmem:[%s3 + $0x2b8] sm:$0xff]
  %v436 = vld [vmem:[%s3 + $0x2c0] sm:$0xff]
  %v437 = vld [vmem:[%s3 + $0x2c8] sm:$0xff]
  %v438 = vld [vmem:[%s3 + $0x2d0] sm:$0xff]
  %v439 = vld [vmem:[%s3 + $0x2d8] sm:$0xff]
  %v440 = vld [vmem:[%s3 + $0x2e0] sm:$0xff]
  %v441 = vld [vmem:[%s3 + $0x2e8] sm:$0xff]
  %v442 = vld [vmem:[%s3 + $0x2f0] sm:$0xff]
  %v443 = vld [vmem:[%s3 + $0x2f8] sm:$0xff]
  %v444 = vld [vmem:[%s3 + $0x300] sm:$0xff]
  %v445 = vld [vmem:[%s3 + $0x308] sm:$0xff]
  %v446 = vld [vmem:[%s3 + $0x310] sm:$0xff]
  %v447 = vld [vmem:[%s3 + $0x318] sm:$0xff]
  %v448 = vld [vmem:[%s3 + $0x320] sm:$0xff]
  %v449 = vld [vmem:[%s3 + $0x328] sm:$0xff]
  %v450 = vld [vmem:[%s3 + $0x330] sm:$0xff]
  %v451 = vld [vmem:[%s3 + $0x338] sm:$0xff]
  %v452 = vld [vmem:[%s3 + $0x340] sm:$0xff]
  %v453 = vld [vmem:[%s3 + $0x348] sm:$0xff]
  %v454 = vld [vmem:[%s3 + $0x350] sm:$0xff]
  %v455 = vld [vmem:[%s3 + $0x358] sm:$0xff]
  %v456 = vld [vmem:[%s3 + $0x360] sm:$0xff]
  %v457 = vld [vmem:[%s3 + $0x368] sm:$0xff]
  %v458 = vld [vmem:[%s3 + $0x370] sm:$0xff]
  %v459 = vld [vmem:[%s3 + $0x378] sm:$0xff]
  %v460 = vld [vmem:[%s3 + $0x380] sm:$0xff]
  %v461 = vld [vmem:[%s3 + $0x388] sm:$0xff]
  %v462 = vld [vmem:[%s3 + $0x390] sm:$0xff]
  %v463 = vld [vmem:[%s3 + $0x398] sm:$0xff]
  %v464 = vld [vmem:[%s3 + $0x3a0] sm:$0xff]
  %v465 = vld [vmem:[%s3 + $0x3a8] sm:$0xff]
  %v466 = vld [vmem:[%s3 + $0x3b0] sm:$0xff]
  %v467 = vld [vmem:[%s3 + $0x3b8] sm:$0xff]
  %v468 = vld [vmem:[%s3 + $0x3c0] sm:$0xff]
  %v469 = vld [vmem:[%s3 + $0x3c8] sm:$0xff]
  %v470 = vld [vmem:[%s3 + $0x3d0] sm:$0xff]
  %v471 = vld [vmem:[%s3 + $0x3d8] sm:$0xff]
  %v472 = vld [vmem:[%s3 + $0x3e0] sm:$0xff]
  %v473 = vld [vmem:[%s3 + $0x3e8] sm:$0xff]
  %v474 = vld [vmem:[%s3 + $0x3f0] sm:$0xff]
  %v475 = vld [vmem:[%s3 + $0x3f8] sm:$0xff]
  %v476 = vld [vmem:[%s4] sm:$0xf]
  %v478 = vlaneseq
  %v479 = vshrl.u32 %v478, 7
  %v480 = vsub.s32 0, %v479
  %v481 = vrot.slane %v476, %v480
  %v482 = vlaneseq
  %v483 = vshrl.u32 %v482, 7
  %v484 = vsub.s32 1, %v483
  %v485 = vrot.slane %v476, %v484
  %v486 = vlaneseq
  %v487 = vshrl.u32 %v486, 7
  %v488 = vsub.s32 2, %v487
  %v489 = vrot.slane %v476, %v488
  %v490 = vlaneseq
  %v491 = vshrl.u32 %v490, 7
  %v492 = vsub.s32 3, %v491
  %v493 = vrot.slane %v476, %v492
  %v626 = vunpack.c.l.b16 %v348
  %v627 = vunpack.c.h.b16 %v348
  %v628 = vunpack.c.l.b16 %v349
  %v629 = vunpack.c.h.b16 %v349
  %v630 = vunpack.c.l.b16 %v350
  %v631 = vunpack.c.h.b16 %v350
  %v632 = vunpack.c.l.b16 %v351
  %v633 = vunpack.c.h.b16 %v351
  %v634 = vunpack.c.l.b16 %v352
  %v635 = vunpack.c.h.b16 %v352
  %v636 = vunpack.c.l.b16 %v353
  %v637 = vunpack.c.h.b16 %v353
  %v638 = vunpack.c.l.b16 %v354
  %v639 = vunpack.c.h.b16 %v354
  %v640 = vunpack.c.l.b16 %v355
  %v641 = vunpack.c.h.b16 %v355
  %v642 = vunpack.c.l.b16 %v356
  %v643 = vunpack.c.h.b16 %v356
  %v644 = vunpack.c.l.b16 %v357
  %v645 = vunpack.c.h.b16 %v357
  %v646 = vunpack.c.l.b16 %v358
  %v647 = vunpack.c.h.b16 %v358
  %v648 = vunpack.c.l.b16 %v359
  %v649 = vunpack.c.h.b16 %v359
  %v650 = vunpack.c.l.b16 %v360
  %v651 = vunpack.c.h.b16 %v360
  %v652 = vunpack.c.l.b16 %v361
  %v653 = vunpack.c.h.b16 %v361
  %v654 = vunpack.c.l.b16 %v362
  %v655 = vunpack.c.h.b16 %v362
  %v656 = vunpack.c.l.b16 %v363
  %v657 = vunpack.c.h.b16 %v363
  %v658 = vunpack.c.l.b16 %v364
  %v659 = vunpack.c.h.b16 %v364
  %v660 = vunpack.c.l.b16 %v365
  %v661 = vunpack.c.h.b16 %v365
  %v662 = vunpack.c.l.b16 %v366
  %v663 = vunpack.c.h.b16 %v366
  %v664 = vunpack.c.l.b16 %v367
  %v665 = vunpack.c.h.b16 %v367
  %v666 = vunpack.c.l.b16 %v368
  %v667 = vunpack.c.h.b16 %v368
  %v668 = vunpack.c.l.b16 %v369
  %v669 = vunpack.c.h.b16 %v369
  %v670 = vunpack.c.l.b16 %v370
  %v671 = vunpack.c.h.b16 %v370
  %v672 = vunpack.c.l.b16 %v371
  %v673 = vunpack.c.h.b16 %v371
  %v674 = vunpack.c.l.b16 %v372
  %v675 = vunpack.c.h.b16 %v372
  %v676 = vunpack.c.l.b16 %v373
  %v677 = vunpack.c.h.b16 %v373
  %v678 = vunpack.c.l.b16 %v374
  %v679 = vunpack.c.h.b16 %v374
  %v680 = vunpack.c.l.b16 %v375
  %v681 = vunpack.c.h.b16 %v375
  %v682 = vunpack.c.l.b16 %v376
  %v683 = vunpack.c.h.b16 %v376
  %v684 = vunpack.c.l.b16 %v377
  %v685 = vunpack.c.h.b16 %v377
  %v686 = vunpack.c.l.b16 %v378
  %v687 = vunpack.c.h.b16 %v378
  %v688 = vunpack.c.l.b16 %v379
  %v689 = vunpack.c.h.b16 %v379
  %v690 = vunpack.c.l.b16 %v380
  %v691 = vunpack.c.h.b16 %v380
  %v692 = vunpack.c.l.b16 %v381
  %v693 = vunpack.c.h.b16 %v381
  %v694 = vunpack.c.l.b16 %v382
  %v695 = vunpack.c.h.b16 %v382
  %v696 = vunpack.c.l.b16 %v383
  %v697 = vunpack.c.h.b16 %v383
  %v698 = vunpack.c.l.b16 %v384
  %v699 = vunpack.c.h.b16 %v384
  %v700 = vunpack.c.l.b16 %v385
  %v701 = vunpack.c.h.b16 %v385
  %v702 = vunpack.c.l.b16 %v386
  %v703 = vunpack.c.h.b16 %v386
  %v704 = vunpack.c.l.b16 %v387
  %v705 = vunpack.c.h.b16 %v387
  %v706 = vunpack.c.l.b16 %v388
  %v707 = vunpack.c.h.b16 %v388
  %v708 = vunpack.c.l.b16 %v389
  %v709 = vunpack.c.h.b16 %v389
  %v710 = vunpack.c.l.b16 %v390
  %v711 = vunpack.c.h.b16 %v390
  %v712 = vunpack.c.l.b16 %v391
  %v713 = vunpack.c.h.b16 %v391
  %v714 = vunpack.c.l.b16 %v392
  %v715 = vunpack.c.h.b16 %v392
  %v716 = vunpack.c.l.b16 %v393
  %v717 = vunpack.c.h.b16 %v393
  %v718 = vunpack.c.l.b16 %v394
  %v719 = vunpack.c.h.b16 %v394
  %v720 = vunpack.c.l.b16 %v395
  %v721 = vunpack.c.h.b16 %v395
  %v722 = vunpack.c.l.b16 %v396
  %v723 = vunpack.c.h.b16 %v396
  %v724 = vunpack.c.l.b16 %v397
  %v725 = vunpack.c.h.b16 %v397
  %v726 = vunpack.c.l.b16 %v398
  %v727 = vunpack.c.h.b16 %v398
  %v728 = vunpack.c.l.b16 %v399
  %v729 = vunpack.c.h.b16 %v399
  %v730 = vunpack.c.l.b16 %v400
  %v731 = vunpack.c.h.b16 %v400
  %v732 = vunpack.c.l.b16 %v401
  %v733 = vunpack.c.h.b16 %v401
  %v734 = vunpack.c.l.b16 %v402
  %v735 = vunpack.c.h.b16 %v402
  %v736 = vunpack.c.l.b16 %v403
  %v737 = vunpack.c.h.b16 %v403
  %v738 = vunpack.c.l.b16 %v404
  %v739 = vunpack.c.h.b16 %v404
  %v740 = vunpack.c.l.b16 %v405
  %v741 = vunpack.c.h.b16 %v405
  %v742 = vunpack.c.l.b16 %v406
  %v743 = vunpack.c.h.b16 %v406
  %v744 = vunpack.c.l.b16 %v407
  %v745 = vunpack.c.h.b16 %v407
  %v746 = vunpack.c.l.b16 %v408
  %v747 = vunpack.c.h.b16 %v408
  %v748 = vunpack.c.l.b16 %v409
  %v749 = vunpack.c.h.b16 %v409
  %v750 = vunpack.c.l.b16 %v410
  %v751 = vunpack.c.h.b16 %v410
  %v752 = vunpack.c.l.b16 %v411
  %v753 = vunpack.c.h.b16 %v411
  %v754 = vunpack.c.l.b16 %v412
  %v755 = vunpack.c.h.b16 %v412
  %v756 = vunpack.c.l.b16 %v413
  %v757 = vunpack.c.h.b16 %v413
  %v758 = vunpack.c.l.b16 %v414
  %v759 = vunpack.c.h.b16 %v414
  %v760 = vunpack.c.l.b16 %v415
  %v761 = vunpack.c.h.b16 %v415
  %v762 = vunpack.c.l.b16 %v416
  %v763 = vunpack.c.h.b16 %v416
  %v764 = vunpack.c.l.b16 %v417
  %v765 = vunpack.c.h.b16 %v417
  %v766 = vunpack.c.l.b16 %v418
  %v767 = vunpack.c.h.b16 %v418
  %v768 = vunpack.c.l.b16 %v419
  %v769 = vunpack.c.h.b16 %v419
  %v770 = vunpack.c.l.b16 %v420
  %v771 = vunpack.c.h.b16 %v420
  %v772 = vunpack.c.l.b16 %v421
  %v773 = vunpack.c.h.b16 %v421
  %v774 = vunpack.c.l.b16 %v422
  %v775 = vunpack.c.h.b16 %v422
  %v776 = vunpack.c.l.b16 %v423
  %v777 = vunpack.c.h.b16 %v423
  %v778 = vunpack.c.l.b16 %v424
  %v779 = vunpack.c.h.b16 %v424
  %v780 = vunpack.c.l.b16 %v425
  %v781 = vunpack.c.h.b16 %v425
  %v782 = vunpack.c.l.b16 %v426
  %v783 = vunpack.c.h.b16 %v426
  %v784 = vunpack.c.l.b16 %v427
  %v785 = vunpack.c.h.b16 %v427
  %v786 = vunpack.c.l.b16 %v428
  %v787 = vunpack.c.h.b16 %v428
  %v788 = vunpack.c.l.b16 %v429
  %v789 = vunpack.c.h.b16 %v429
  %v790 = vunpack.c.l.b16 %v430
  %v791 = vunpack.c.h.b16 %v430
  %v792 = vunpack.c.l.b16 %v431
  %v793 = vunpack.c.h.b16 %v431
  %v794 = vunpack.c.l.b16 %v432
  %v795 = vunpack.c.h.b16 %v432
  %v796 = vunpack.c.l.b16 %v433
  %v797 = vunpack.c.h.b16 %v433
  %v798 = vunpack.c.l.b16 %v434
  %v799 = vunpack.c.h.b16 %v434
  %v800 = vunpack.c.l.b16 %v435
  %v801 = vunpack.c.h.b16 %v435
  %v802 = vunpack.c.l.b16 %v436
  %v803 = vunpack.c.h.b16 %v436
  %v804 = vunpack.c.l.b16 %v437
  %v805 = vunpack.c.h.b16 %v437
  %v806 = vunpack.c.l.b16 %v438
  %v807 = vunpack.c.h.b16 %v438
  %v808 = vunpack.c.l.b16 %v439
  %v809 = vunpack.c.h.b16 %v439
  %v810 = vunpack.c.l.b16 %v440
  %v811 = vunpack.c.h.b16 %v440
  %v812 = vunpack.c.l.b16 %v441
  %v813 = vunpack.c.h.b16 %v441
  %v814 = vunpack.c.l.b16 %v442
  %v815 = vunpack.c.h.b16 %v442
  %v816 = vunpack.c.l.b16 %v443
  %v817 = vunpack.c.h.b16 %v443
  %v818 = vunpack.c.l.b16 %v444
  %v819 = vunpack.c.h.b16 %v444
  %v820 = vunpack.c.l.b16 %v445
  %v821 = vunpack.c.h.b16 %v445
  %v822 = vunpack.c.l.b16 %v446
  %v823 = vunpack.c.h.b16 %v446
  %v824 = vunpack.c.l.b16 %v447
  %v825 = vunpack.c.h.b16 %v447
  %v826 = vunpack.c.l.b16 %v448
  %v827 = vunpack.c.h.b16 %v448
  %v828 = vunpack.c.l.b16 %v449
  %v829 = vunpack.c.h.b16 %v449
  %v830 = vunpack.c.l.b16 %v450
  %v831 = vunpack.c.h.b16 %v450
  %v832 = vunpack.c.l.b16 %v451
  %v833 = vunpack.c.h.b16 %v451
  %v834 = vunpack.c.l.b16 %v452
  %v835 = vunpack.c.h.b16 %v452
  %v836 = vunpack.c.l.b16 %v453
  %v837 = vunpack.c.h.b16 %v453
  %v838 = vunpack.c.l.b16 %v454
  %v839 = vunpack.c.h.b16 %v454
  %v840 = vunpack.c.l.b16 %v455
  %v841 = vunpack.c.h.b16 %v455
  %v842 = vunpack.c.l.b16 %v456
  %v843 = vunpack.c.h.b16 %v456
  %v844 = vunpack.c.l.b16 %v457
  %v845 = vunpack.c.h.b16 %v457
  %v846 = vunpack.c.l.b16 %v458
  %v847 = vunpack.c.h.b16 %v458
  %v848 = vunpack.c.l.b16 %v459
  %v849 = vunpack.c.h.b16 %v459
  %v850 = vunpack.c.l.b16 %v460
  %v851 = vunpack.c.h.b16 %v460
  %v852 = vunpack.c.l.b16 %v461
  %v853 = vunpack.c.h.b16 %v461
  %v854 = vunpack.c.l.b16 %v462
  %v855 = vunpack.c.h.b16 %v462
  %v856 = vunpack.c.l.b16 %v463
  %v857 = vunpack.c.h.b16 %v463
  %v858 = vunpack.c.l.b16 %v464
  %v859 = vunpack.c.h.b16 %v464
  %v860 = vunpack.c.l.b16 %v465
  %v861 = vunpack.c.h.b16 %v465
  %v862 = vunpack.c.l.b16 %v466
  %v863 = vunpack.c.h.b16 %v466
  %v864 = vunpack.c.l.b16 %v467
  %v865 = vunpack.c.h.b16 %v467
  %v866 = vunpack.c.l.b16 %v468
  %v867 = vunpack.c.h.b16 %v468
  %v868 = vunpack.c.l.b16 %v469
  %v869 = vunpack.c.h.b16 %v469
  %v870 = vunpack.c.l.b16 %v470
  %v871 = vunpack.c.h.b16 %v470
  %v872 = vunpack.c.l.b16 %v471
  %v873 = vunpack.c.h.b16 %v471
  %v874 = vunpack.c.l.b16 %v472
  %v875 = vunpack.c.h.b16 %v472
  %v876 = vunpack.c.l.b16 %v473
  %v877 = vunpack.c.h.b16 %v473
  %v878 = vunpack.c.l.b16 %v474
  %v879 = vunpack.c.h.b16 %v474
  %v880 = vunpack.c.l.b16 %v475
  %v881 = vunpack.c.h.b16 %v475
  %v882 = vpack.c.b16 %v630, %v626
  %v883 = vpack.c.b16 %v631, %v627
  %v884 = vpack.c.b16 %v632, %v628
  %v885 = vpack.c.b16 %v633, %v629
  %v886 = vpack.c.b16 %v638, %v634
  %v887 = vpack.c.b16 %v639, %v635
  %v888 = vpack.c.b16 %v640, %v636
  %v889 = vpack.c.b16 %v641, %v637
  %v890 = vpack.c.b16 %v646, %v642
  %v891 = vpack.c.b16 %v647, %v643
  %v892 = vpack.c.b16 %v648, %v644
  %v893 = vpack.c.b16 %v649, %v645
  %v894 = vpack.c.b16 %v654, %v650
  %v895 = vpack.c.b16 %v655, %v651
  %v896 = vpack.c.b16 %v656, %v652
  %v897 = vpack.c.b16 %v657, %v653
  %v898 = vpack.c.b16 %v662, %v658
  %v899 = vpack.c.b16 %v663, %v659
  %v900 = vpack.c.b16 %v664, %v660
  %v901 = vpack.c.b16 %v665, %v661
  %v902 = vpack.c.b16 %v670, %v666
  %v903 = vpack.c.b16 %v671, %v667
  %v904 = vpack.c.b16 %v672, %v668
  %v905 = vpack.c.b16 %v673, %v669
  %v906 = vpack.c.b16 %v678, %v674
  %v907 = vpack.c.b16 %v679, %v675
  %v908 = vpack.c.b16 %v680, %v676
  %v909 = vpack.c.b16 %v681, %v677
  %v910 = vpack.c.b16 %v686, %v682
  %v911 = vpack.c.b16 %v687, %v683
  %v912 = vpack.c.b16 %v688, %v684
  %v913 = vpack.c.b16 %v689, %v685
  %v914 = vpack.c.b16 %v694, %v690
  %v915 = vpack.c.b16 %v695, %v691
  %v916 = vpack.c.b16 %v696, %v692
  %v917 = vpack.c.b16 %v697, %v693
  %v918 = vpack.c.b16 %v702, %v698
  %v919 = vpack.c.b16 %v703, %v699
  %v920 = vpack.c.b16 %v704, %v700
  %v921 = vpack.c.b16 %v705, %v701
  %v922 = vpack.c.b16 %v710, %v706
  %v923 = vpack.c.b16 %v711, %v707
  %v924 = vpack.c.b16 %v712, %v708
  %v925 = vpack.c.b16 %v713, %v709
  %v926 = vpack.c.b16 %v718, %v714
  %v927 = vpack.c.b16 %v719, %v715
  %v928 = vpack.c.b16 %v720, %v716
  %v929 = vpack.c.b16 %v721, %v717
  %v930 = vpack.c.b16 %v726, %v722
  %v931 = vpack.c.b16 %v727, %v723
  %v932 = vpack.c.b16 %v728, %v724
  %v933 = vpack.c.b16 %v729, %v725
  %v934 = vpack.c.b16 %v734, %v730
  %v935 = vpack.c.b16 %v735, %v731
  %v936 = vpack.c.b16 %v736, %v732
  %v937 = vpack.c.b16 %v737, %v733
  %v938 = vpack.c.b16 %v742, %v738
  %v939 = vpack.c.b16 %v743, %v739
  %v940 = vpack.c.b16 %v744, %v740
  %v941 = vpack.c.b16 %v745, %v741
  %v942 = vpack.c.b16 %v750, %v746
  %v943 = vpack.c.b16 %v751, %v747
  %v944 = vpack.c.b16 %v752, %v748
  %v945 = vpack.c.b16 %v753, %v749
  %v946 = vpack.c.b16 %v758, %v754
  %v947 = vpack.c.b16 %v759, %v755
  %v948 = vpack.c.b16 %v760, %v756
  %v949 = vpack.c.b16 %v761, %v757
  %v950 = vpack.c.b16 %v766, %v762
  %v951 = vpack.c.b16 %v767, %v763
  %v952 = vpack.c.b16 %v768, %v764
  %v953 = vpack.c.b16 %v769, %v765
  %v954 = vpack.c.b16 %v774, %v770
  %v955 = vpack.c.b16 %v775, %v771
  %v956 = vpack.c.b16 %v776, %v772
  %v957 = vpack.c.b16 %v777, %v773
  %v958 = vpack.c.b16 %v782, %v778
  %v959 = vpack.c.b16 %v783, %v779
  %v960 = vpack.c.b16 %v784, %v780
  %v961 = vpack.c.b16 %v785, %v781
  %v962 = vpack.c.b16 %v790, %v786
  %v963 = vpack.c.b16 %v791, %v787
  %v964 = vpack.c.b16 %v792, %v788
  %v965 = vpack.c.b16 %v793, %v789
  %v966 = vpack.c.b16 %v798, %v794
  %v967 = vpack.c.b16 %v799, %v795
  %v968 = vpack.c.b16 %v800, %v796
  %v969 = vpack.c.b16 %v801, %v797
  %v970 = vpack.c.b16 %v806, %v802
  %v971 = vpack.c.b16 %v807, %v803
  %v972 = vpack.c.b16 %v808, %v804
  %v973 = vpack.c.b16 %v809, %v805
  %v974 = vpack.c.b16 %v814, %v810
  %v975 = vpack.c.b16 %v815, %v811
  %v976 = vpack.c.b16 %v816, %v812
  %v977 = vpack.c.b16 %v817, %v813
  %v978 = vpack.c.b16 %v822, %v818
  %v979 = vpack.c.b16 %v823, %v819
  %v980 = vpack.c.b16 %v824, %v820
  %v981 = vpack.c.b16 %v825, %v821
  %v982 = vpack.c.b16 %v830, %v826
  %v983 = vpack.c.b16 %v831, %v827
  %v984 = vpack.c.b16 %v832, %v828
  %v985 = vpack.c.b16 %v833, %v829
  %v986 = vpack.c.b16 %v838, %v834
  %v987 = vpack.c.b16 %v839, %v835
  %v988 = vpack.c.b16 %v840, %v836
  %v989 = vpack.c.b16 %v841, %v837
  %v990 = vpack.c.b16 %v846, %v842
  %v991 = vpack.c.b16 %v847, %v843
  %v992 = vpack.c.b16 %v848, %v844
  %v993 = vpack.c.b16 %v849, %v845
  %v994 = vpack.c.b16 %v854, %v850
  %v995 = vpack.c.b16 %v855, %v851
  %v996 = vpack.c.b16 %v856, %v852
  %v997 = vpack.c.b16 %v857, %v853
  %v998 = vpack.c.b16 %v862, %v858
  %v999 = vpack.c.b16 %v863, %v859
  %v1000 = vpack.c.b16 %v864, %v860
  %v1001 = vpack.c.b16 %v865, %v861
  %v1002 = vpack.c.b16 %v870, %v866
  %v1003 = vpack.c.b16 %v871, %v867
  %v1004 = vpack.c.b16 %v872, %v868
  %v1005 = vpack.c.b16 %v873, %v869
  %v1006 = vpack.c.b16 %v878, %v874
  %v1007 = vpack.c.b16 %v879, %v875
  %v1008 = vpack.c.b16 %v880, %v876
  %v1009 = vpack.c.b16 %v881, %v877
  %1138 = vmatprep.subr.bf16.mxu0 %v883
  %1139 = vmatpush1.bf16.msra.mxu0 %v882
  %1140 = vmatprep.subr.bf16.mxu0 %v887
  %1141 = vmatpush1.bf16.msra.mxu0 %v886
  %1142 = vmatprep.subr.bf16.mxu0 %v891
  %1143 = vmatpush1.bf16.msra.mxu0 %v890
  %1144 = vmatprep.subr.bf16.mxu0 %v895
  %1145 = vmatpush1.bf16.msra.mxu0 %v894
  %1146 = vmatprep.subr.bf16.mxu0 %v899
  %1147 = vmatpush1.bf16.msra.mxu0 %v898
  %1148 = vmatprep.subr.bf16.mxu0 %v903
  %1149 = vmatpush1.bf16.msra.mxu0 %v902
  %1150 = vmatprep.subr.bf16.mxu0 %v907
  %1151 = vmatpush1.bf16.msra.mxu0 %v906
  %1152 = vmatprep.subr.bf16.mxu0 %v911
  %1153 = vmatpush1.bf16.msra.mxu0 %v910
  %1154 = vmatprep.subr.bf16.mxu0 %v915
  %1155 = vmatpush1.bf16.msra.mxu0 %v914
  %1156 = vmatprep.subr.bf16.mxu0 %v919
  %1157 = vmatpush1.bf16.msra.mxu0 %v918
  %1158 = vmatprep.subr.bf16.mxu0 %v923
  %1159 = vmatpush1.bf16.msra.mxu0 %v922
  %1160 = vmatprep.subr.bf16.mxu0 %v927
  %1161 = vmatpush1.bf16.msra.mxu0 %v926
  %1162 = vmatprep.subr.bf16.mxu0 %v931
  %1163 = vmatpush1.bf16.msra.mxu0 %v930
  %1164 = vmatprep.subr.bf16.mxu0 %v935
  %1165 = vmatpush1.bf16.msra.mxu0 %v934
  %1166 = vmatprep.subr.bf16.mxu0 %v939
  %1167 = vmatpush1.bf16.msra.mxu0 %v938
  %1168 = vmatprep.subr.bf16.mxu0 %v943
  %1169 = vmatpush1.bf16.msra.mxu0 %v942
  %1170 = vmatprep.mubr.bf16.mxu0 %v345
  %1171 = vmatmul.mubr.bf16.gmra.mrb[0].mxu0 %v344
  %v1172 = vpop.f32.mrb[0].mxu0
  %v1173 = vadd.f32 %v481, %v1172
  %v1174 = vpop.f32.mrb[0].mxu0
  %v1175 = vadd.f32 %v485, %v1174
  %v1176 = vpop.f32.mrb[0].mxu0
  %v1177 = vadd.f32 %v481, %v1176
  %v1178 = vpop.f32.mrb[0].mxu0
  %v1179 = vadd.f32 %v485, %v1178
  %1180 = vdwg.mxu0
  %1181 = vmatprep.subr.bf16.mxu0 %v947
  %1182 = vmatpush1.bf16.msra.mxu0 %v946
  %1183 = vmatprep.subr.bf16.mxu0 %v951
  %1184 = vmatpush1.bf16.msra.mxu0 %v950
  %1185 = vmatprep.subr.bf16.mxu0 %v955
  %1186 = vmatpush1.bf16.msra.mxu0 %v954
  %1187 = vmatprep.subr.bf16.mxu0 %v959
  %1188 = vmatpush1.bf16.msra.mxu0 %v958
  %1189 = vmatprep.subr.bf16.mxu0 %v963
  %1190 = vmatpush1.bf16.msra.mxu0 %v962
  %1191 = vmatprep.subr.bf16.mxu0 %v967
  %1192 = vmatpush1.bf16.msra.mxu0 %v966
  %1193 = vmatprep.subr.bf16.mxu0 %v971
  %1194 = vmatpush1.bf16.msra.mxu0 %v970
  %1195 = vmatprep.subr.bf16.mxu0 %v975
  %1196 = vmatpush1.bf16.msra.mxu0 %v974
  %1197 = vmatprep.subr.bf16.mxu0 %v979
  %1198 = vmatpush1.bf16.msra.mxu0 %v978
  %1199 = vmatprep.subr.bf16.mxu0 %v983
  %1200 = vmatpush1.bf16.msra.mxu0 %v982
  %1201 = vmatprep.subr.bf16.mxu0 %v987
  %1202 = vmatpush1.bf16.msra.mxu0 %v986
  %1203 = vmatprep.subr.bf16.mxu0 %v991
  %1204 = vmatpush1.bf16.msra.mxu0 %v990
  %1205 = vmatprep.subr.bf16.mxu0 %v995
  %1206 = vmatpush1.bf16.msra.mxu0 %v994
  %1207 = vmatprep.subr.bf16.mxu0 %v999
  %1208 = vmatpush1.bf16.msra.mxu0 %v998
  %1209 = vmatprep.subr.bf16.mxu0 %v1003
  %1210 = vmatpush1.bf16.msra.mxu0 %v1002
  %1211 = vmatprep.subr.bf16.mxu0 %v1007
  %1212 = vmatpush1.bf16.msra.mxu0 %v1006
  %1213 = vmatprep.mubr.bf16.mxu0 %v347
  %1214 = vmatmul.mubr.bf16.gmra.mrb[0].mxu0 %v346
  %v1215 = vpop.f32.mrb[0].mxu0
  %v1216 = vadd.f32 %v1173, %v1215
  %v1217 = vpop.f32.mrb[0].mxu0
  %v1218 = vadd.f32 %v1175, %v1217
  %v1219 = vpop.f32.mrb[0].mxu0
  %v1220 = vadd.f32 %v1177, %v1219
  %v1221 = vpop.f32.mrb[0].mxu0
  %v1222 = vadd.f32 %v1179, %v1221
  %1223 = vdwg.mxu0
  %1224 = vmatprep.subr.bf16.mxu0 %v885
  %1225 = vmatpush1.bf16.msra.mxu0 %v884
  %1226 = vmatprep.subr.bf16.mxu0 %v889
  %1227 = vmatpush1.bf16.msra.mxu0 %v888
  %1228 = vmatprep.subr.bf16.mxu0 %v893
  %1229 = vmatpush1.bf16.msra.mxu0 %v892
  %1230 = vmatprep.subr.bf16.mxu0 %v897
  %1231 = vmatpush1.bf16.msra.mxu0 %v896
  %1232 = vmatprep.subr.bf16.mxu0 %v901
  %1233 = vmatpush1.bf16.msra.mxu0 %v900
  %1234 = vmatprep.subr.bf16.mxu0 %v905
  %1235 = vmatpush1.bf16.msra.mxu0 %v904
  %1236 = vmatprep.subr.bf16.mxu0 %v909
  %1237 = vmatpush1.bf16.msra.mxu0 %v908
  %1238 = vmatprep.subr.bf16.mxu0 %v913
  %1239 = vmatpush1.bf16.msra.mxu0 %v912
  %1240 = vmatprep.subr.bf16.mxu0 %v917
  %1241 = vmatpush1.bf16.msra.mxu0 %v916
  %1242 = vmatprep.subr.bf16.mxu0 %v921
  %1243 = vmatpush1.bf16.msra.mxu0 %v920
  %1244 = vmatprep.subr.bf16.mxu0 %v925
  %1245 = vmatpush1.bf16.msra.mxu0 %v924
  %1246 = vmatprep.subr.bf16.mxu0 %v929
  %1247 = vmatpush1.bf16.msra.mxu0 %v928
  %1248 = vmatprep.subr.bf16.mxu0 %v933
  %1249 = vmatpush1.bf16.msra.mxu0 %v932
  %1250 = vmatprep.subr.bf16.mxu0 %v937
  %1251 = vmatpush1.bf16.msra.mxu0 %v936
  %1252 = vmatprep.subr.bf16.mxu0 %v941
  %1253 = vmatpush1.bf16.msra.mxu0 %v940
  %1254 = vmatprep.subr.bf16.mxu0 %v945
  %1255 = vmatpush1.bf16.msra.mxu0 %v944
  %1256 = vmatprep.mubr.bf16.mxu0 %v345
  %1257 = vmatmul.mubr.bf16.gmra.mrb[0].mxu0 %v344
  %v1258 = vpop.f32.mrb[0].mxu0
  %v1259 = vadd.f32 %v489, %v1258
  %v1260 = vpop.f32.mrb[0].mxu0
  %v1261 = vadd.f32 %v493, %v1260
  %v1262 = vpop.f32.mrb[0].mxu0
  %v1263 = vadd.f32 %v489, %v1262
  %v1264 = vpop.f32.mrb[0].mxu0
  %v1265 = vadd.f32 %v493, %v1264
  %1266 = vdwg.mxu0
  %1267 = vmatprep.subr.bf16.mxu0 %v949
  %1268 = vmatpush1.bf16.msra.mxu0 %v948
  %1269 = vmatprep.subr.bf16.mxu0 %v953
  %1270 = vmatpush1.bf16.msra.mxu0 %v952
  %1271 = vmatprep.subr.bf16.mxu0 %v957
  %1272 = vmatpush1.bf16.msra.mxu0 %v956
  %1273 = vmatprep.subr.bf16.mxu0 %v961
  %1274 = vmatpush1.bf16.msra.mxu0 %v960
  %1275 = vmatprep.subr.bf16.mxu0 %v965
  %1276 = vmatpush1.bf16.msra.mxu0 %v964
  %1277 = vmatprep.subr.bf16.mxu0 %v969
  %1278 = vmatpush1.bf16.msra.mxu0 %v968
  %1279 = vmatprep.subr.bf16.mxu0 %v973
  %1280 = vmatpush1.bf16.msra.mxu0 %v972
  %1281 = vmatprep.subr.bf16.mxu0 %v977
  %1282 = vmatpush1.bf16.msra.mxu0 %v976
  %1283 = vmatprep.subr.bf16.mxu0 %v981
  %1284 = vmatpush1.bf16.msra.mxu0 %v980
  %1285 = vmatprep.subr.bf16.mxu0 %v985
  %1286 = vmatpush1.bf16.msra.mxu0 %v984
  %1287 = vmatprep.subr.bf16.mxu0 %v989
  %1288 = vmatpush1.bf16.msra.mxu0 %v988
  %1289 = vmatprep.subr.bf16.mxu0 %v993
  %1290 = vmatpush1.bf16.msra.mxu0 %v992
  %1291 = vmatprep.subr.bf16.mxu0 %v997
  %1292 = vmatpush1.bf16.msra.mxu0 %v996
  %1293 = vmatprep.subr.bf16.mxu0 %v1001
  %1294 = vmatpush1.bf16.msra.mxu0 %v1000
  %1295 = vmatprep.subr.bf16.mxu0 %v1005
  %1296 = vmatpush1.bf16.msra.mxu0 %v1004
  %1297 = vmatprep.subr.bf16.mxu0 %v1009
  %1298 = vmatpush1.bf16.msra.mxu0 %v1008
  %1299 = vmatprep.mubr.bf16.mxu0 %v347
  %1300 = vmatmul.mubr.bf16.gmra.mrb[0].mxu0 %v346
  %v1301 = vpop.f32.mrb[0].mxu0
  %v1302 = vadd.f32 %v1259, %v1301
  %v1303 = vpop.f32.mrb[0].mxu0
  %v1304 = vadd.f32 %v1261, %v1303
  %v1305 = vpop.f32.mrb[0].mxu0
  %v1306 = vadd.f32 %v1263, %v1305
  %v1307 = vpop.f32.mrb[0].mxu0
  %v1308 = vadd.f32 %v1265, %v1307
  %1309 = vdwg.mxu0
  %v1310 = vmax.f32 %v1216, 0.0
  %v1311 = vmax.f32 %v1218, 0.0
  %v1312 = vmax.f32 %v1302, 0.0
  %v1313 = vmax.f32 %v1304, 0.0
  %v1314 = vmax.f32 %v1220, 0.0
  %v1315 = vmax.f32 %v1222, 0.0
  %v1316 = vmax.f32 %v1306, 0.0
  %v1317 = vmax.f32 %v1308, 0.0
  %v1318 = vpack.c.bf16 %v1314, %v1310
  %v1319 = vpack.c.bf16 %v1315, %v1311
  %v1320 = vpack.c.bf16 %v1316, %v1312
  %v1321 = vpack.c.bf16 %v1317, %v1313
  %v1322 = vld [vmem:[%s5] sm:$0xff]
  %v1323 = vld [vmem:[%s5 + $0x8] sm:$0xff]
  %v1324 = vld [vmem:[%s5 + $0x10] sm:$0xff]
  %v1325 = vld [vmem:[%s5 + $0x18] sm:$0xff]
  %v1326 = vld [vmem:[%s5 + $0x20] sm:$0xff]
  %v1327 = vld [vmem:[%s5 + $0x28] sm:$0xff]
  %v1328 = vld [vmem:[%s5 + $0x30] sm:$0xff]
  %v1329 = vld [vmem:[%s5 + $0x38] sm:$0xff]
  %v1330 = vld [vmem:[%s5 + $0x40] sm:$0xff]
  %v1331 = vld [vmem:[%s5 + $0x48] sm:$0xff]
  %v1332 = vld [vmem:[%s5 + $0x50] sm:$0xff]
  %v1333 = vld [vmem:[%s5 + $0x58] sm:$0xff]
  %v1334 = vld [vmem:[%s5 + $0x60] sm:$0xff]
  %v1335 = vld [vmem:[%s5 + $0x68] sm:$0xff]
  %v1336 = vld [vmem:[%s5 + $0x70] sm:$0xff]
  %v1337 = vld [vmem:[%s5 + $0x78] sm:$0xff]
  %v1338 = vld [vmem:[%s5 + $0x80] sm:$0xff]
  %v1339 = vld [vmem:[%s5 + $0x88] sm:$0xff]
  %v1340 = vld [vmem:[%s5 + $0x90] sm:$0xff]
  %v1341 = vld [vmem:[%s5 + $0x98] sm:$0xff]
  %v1342 = vld [vmem:[%s5 + $0xa0] sm:$0xff]
  %v1343 = vld [vmem:[%s5 + $0xa8] sm:$0xff]
  %v1344 = vld [vmem:[%s5 + $0xb0] sm:$0xff]
  %v1345 = vld [vmem:[%s5 + $0xb8] sm:$0xff]
  %v1346 = vld [vmem:[%s5 + $0xc0] sm:$0xff]
  %v1347 = vld [vmem:[%s5 + $0xc8] sm:$0xff]
  %v1348 = vld [vmem:[%s5 + $0xd0] sm:$0xff]
  %v1349 = vld [vmem:[%s5 + $0xd8] sm:$0xff]
  %v1350 = vld [vmem:[%s5 + $0xe0] sm:$0xff]
  %v1351 = vld [vmem:[%s5 + $0xe8] sm:$0xff]
  %v1352 = vld [vmem:[%s5 + $0xf0] sm:$0xff]
  %v1353 = vld [vmem:[%s5 + $0xf8] sm:$0xff]
  %v1354 = vld [vmem:[%s5 + $0x100] sm:$0xff]
  %v1355 = vld [vmem:[%s5 + $0x108] sm:$0xff]
  %v1356 = vld [vmem:[%s5 + $0x110] sm:$0xff]
  %v1357 = vld [vmem:[%s5 + $0x118] sm:$0xff]
  %v1358 = vld [vmem:[%s5 + $0x120] sm:$0xff]
  %v1359 = vld [vmem:[%s5 + $0x128] sm:$0xff]
  %v1360 = vld [vmem:[%s5 + $0x130] sm:$0xff]
  %v1361 = vld [vmem:[%s5 + $0x138] sm:$0xff]
  %v1362 = vld [vmem:[%s5 + $0x140] sm:$0xff]
  %v1363 = vld [vmem:[%s5 + $0x148] sm:$0xff]
  %v1364 = vld [vmem:[%s5 + $0x150] sm:$0xff]
  %v1365 = vld [vmem:[%s5 + $0x158] sm:$0xff]
  %v1366 = vld [vmem:[%s5 + $0x160] sm:$0xff]
  %v1367 = vld [vmem:[%s5 + $0x168] sm:$0xff]
  %v1368 = vld [vmem:[%s5 + $0x170] sm:$0xff]
  %v1369 = vld [vmem:[%s5 + $0x178] sm:$0xff]
  %v1370 = vld [vmem:[%s5 + $0x180] sm:$0xff]
  %v1371 = vld [vmem:[%s5 + $0x188] sm:$0xff]
  %v1372 = vld [vmem:[%s5 + $0x190] sm:$0xff]
  %v1373 = vld [vmem:[%s5 + $0x198] sm:$0xff]
  %v1374 = vld [vmem:[%s5 + $0x1a0] sm:$0xff]
  %v1375 = vld [vmem:[%s5 + $0x1a8] sm:$0xff]
  %v1376 = vld [vmem:[%s5 + $0x1b0] sm:$0xff]
  %v1377 = vld [vmem:[%s5 + $0x1b8] sm:$0xff]
  %v1378 = vld [vmem:[%s5 + $0x1c0] sm:$0xff]
  %v1379 = vld [vmem:[%s5 + $0x1c8] sm:$0xff]
  %v1380 = vld [vmem:[%s5 + $0x1d0] sm:$0xff]
  %v1381 = vld [vmem:[%s5 + $0x1d8] sm:$0xff]
  %v1382 = vld [vmem:[%s5 + $0x1e0] sm:$0xff]
  %v1383 = vld [vmem:[%s5 + $0x1e8] sm:$0xff]
  %v1384 = vld [vmem:[%s5 + $0x1f0] sm:$0xff]
  %v1385 = vld [vmem:[%s5 + $0x1f8] sm:$0xff]
  %v1386 = vld [vmem:[%s5 + $0x200] sm:$0xff]
  %v1387 = vld [vmem:[%s5 + $0x208] sm:$0xff]
  %v1388 = vld [vmem:[%s5 + $0x210] sm:$0xff]
  %v1389 = vld [vmem:[%s5 + $0x218] sm:$0xff]
  %v1390 = vld [vmem:[%s5 + $0x220] sm:$0xff]
  %v1391 = vld [vmem:[%s5 + $0x228] sm:$0xff]
  %v1392 = vld [vmem:[%s5 + $0x230] sm:$0xff]
  %v1393 = vld [vmem:[%s5 + $0x238] sm:$0xff]
  %v1394 = vld [vmem:[%s5 + $0x240] sm:$0xff]
  %v1395 = vld [vmem:[%s5 + $0x248] sm:$0xff]
  %v1396 = vld [vmem:[%s5 + $0x250] sm:$0xff]
  %v1397 = vld [vmem:[%s5 + $0x258] sm:$0xff]
  %v1398 = vld [vmem:[%s5 + $0x260] sm:$0xff]
  %v1399 = vld [vmem:[%s5 + $0x268] sm:$0xff]
  %v1400 = vld [vmem:[%s5 + $0x270] sm:$0xff]
  %v1401 = vld [vmem:[%s5 + $0x278] sm:$0xff]
  %v1402 = vld [vmem:[%s5 + $0x280] sm:$0xff]
  %v1403 = vld [vmem:[%s5 + $0x288] sm:$0xff]
  %v1404 = vld [vmem:[%s5 + $0x290] sm:$0xff]
  %v1405 = vld [vmem:[%s5 + $0x298] sm:$0xff]
  %v1406 = vld [vmem:[%s5 + $0x2a0] sm:$0xff]
  %v1407 = vld [vmem:[%s5 + $0x2a8] sm:$0xff]
  %v1408 = vld [vmem:[%s5 + $0x2b0] sm:$0xff]
  %v1409 = vld [vmem:[%s5 + $0x2b8] sm:$0xff]
  %v1410 = vld [vmem:[%s5 + $0x2c0] sm:$0xff]
  %v1411 = vld [vmem:[%s5 + $0x2c8] sm:$0xff]
  %v1412 = vld [vmem:[%s5 + $0x2d0] sm:$0xff]
  %v1413 = vld [vmem:[%s5 + $0x2d8] sm:$0xff]
  %v1414 = vld [vmem:[%s5 + $0x2e0] sm:$0xff]
  %v1415 = vld [vmem:[%s5 + $0x2e8] sm:$0xff]
  %v1416 = vld [vmem:[%s5 + $0x2f0] sm:$0xff]
  %v1417 = vld [vmem:[%s5 + $0x2f8] sm:$0xff]
  %v1418 = vld [vmem:[%s5 + $0x300] sm:$0xff]
  %v1419 = vld [vmem:[%s5 + $0x308] sm:$0xff]
  %v1420 = vld [vmem:[%s5 + $0x310] sm:$0xff]
  %v1421 = vld [vmem:[%s5 + $0x318] sm:$0xff]
  %v1422 = vld [vmem:[%s5 + $0x320] sm:$0xff]
  %v1423 = vld [vmem:[%s5 + $0x328] sm:$0xff]
  %v1424 = vld [vmem:[%s5 + $0x330] sm:$0xff]
  %v1425 = vld [vmem:[%s5 + $0x338] sm:$0xff]
  %v1426 = vld [vmem:[%s5 + $0x340] sm:$0xff]
  %v1427 = vld [vmem:[%s5 + $0x348] sm:$0xff]
  %v1428 = vld [vmem:[%s5 + $0x350] sm:$0xff]
  %v1429 = vld [vmem:[%s5 + $0x358] sm:$0xff]
  %v1430 = vld [vmem:[%s5 + $0x360] sm:$0xff]
  %v1431 = vld [vmem:[%s5 + $0x368] sm:$0xff]
  %v1432 = vld [vmem:[%s5 + $0x370] sm:$0xff]
  %v1433 = vld [vmem:[%s5 + $0x378] sm:$0xff]
  %v1434 = vld [vmem:[%s5 + $0x380] sm:$0xff]
  %v1435 = vld [vmem:[%s5 + $0x388] sm:$0xff]
  %v1436 = vld [vmem:[%s5 + $0x390] sm:$0xff]
  %v1437 = vld [vmem:[%s5 + $0x398] sm:$0xff]
  %v1438 = vld [vmem:[%s5 + $0x3a0] sm:$0xff]
  %v1439 = vld [vmem:[%s5 + $0x3a8] sm:$0xff]
  %v1440 = vld [vmem:[%s5 + $0x3b0] sm:$0xff]
  %v1441 = vld [vmem:[%s5 + $0x3b8] sm:$0xff]
  %v1442 = vld [vmem:[%s5 + $0x3c0] sm:$0xff]
  %v1443 = vld [vmem:[%s5 + $0x3c8] sm:$0xff]
  %v1444 = vld [vmem:[%s5 + $0x3d0] sm:$0xff]
  %v1445 = vld [vmem:[%s5 + $0x3d8] sm:$0xff]
  %v1446 = vld [vmem:[%s5 + $0x3e0] sm:$0xff]
  %v1447 = vld [vmem:[%s5 + $0x3e8] sm:$0xff]
  %v1448 = vld [vmem:[%s5 + $0x3f0] sm:$0xff]
  %v1449 = vld [vmem:[%s5 + $0x3f8] sm:$0xff]
  %v1450 = vld [vmem:[%s6] sm:$0xf]
  %v1452 = vlaneseq
  %v1453 = vshrl.u32 %v1452, 7
  %v1454 = vsub.s32 0, %v1453
  %v1455 = vrot.slane %v1450, %v1454
  %v1456 = vlaneseq
  %v1457 = vshrl.u32 %v1456, 7
  %v1458 = vsub.s32 1, %v1457
  %v1459 = vrot.slane %v1450, %v1458
  %v1460 = vlaneseq
  %v1461 = vshrl.u32 %v1460, 7
  %v1462 = vsub.s32 2, %v1461
  %v1463 = vrot.slane %v1450, %v1462
  %v1464 = vlaneseq
  %v1465 = vshrl.u32 %v1464, 7
  %v1466 = vsub.s32 3, %v1465
  %v1467 = vrot.slane %v1450, %v1466
  %v1600 = vunpack.c.l.b16 %v1322
  %v1601 = vunpack.c.h.b16 %v1322
  %v1602 = vunpack.c.l.b16 %v1323
  %v1603 = vunpack.c.h.b16 %v1323
  %v1604 = vunpack.c.l.b16 %v1324
  %v1605 = vunpack.c.h.b16 %v1324
  %v1606 = vunpack.c.l.b16 %v1325
  %v1607 = vunpack.c.h.b16 %v1325
  %v1608 = vunpack.c.l.b16 %v1326
  %v1609 = vunpack.c.h.b16 %v1326
  %v1610 = vunpack.c.l.b16 %v1327
  %v1611 = vunpack.c.h.b16 %v1327
  %v1612 = vunpack.c.l.b16 %v1328
  %v1613 = vunpack.c.h.b16 %v1328
  %v1614 = vunpack.c.l.b16 %v1329
  %v1615 = vunpack.c.h.b16 %v1329
  %v1616 = vunpack.c.l.b16 %v1330
  %v1617 = vunpack.c.h.b16 %v1330
  %v1618 = vunpack.c.l.b16 %v1331
  %v1619 = vunpack.c.h.b16 %v1331
  %v1620 = vunpack.c.l.b16 %v1332
  %v1621 = vunpack.c.h.b16 %v1332
  %v1622 = vunpack.c.l.b16 %v1333
  %v1623 = vunpack.c.h.b16 %v1333
  %v1624 = vunpack.c.l.b16 %v1334
  %v1625 = vunpack.c.h.b16 %v1334
  %v1626 = vunpack.c.l.b16 %v1335
  %v1627 = vunpack.c.h.b16 %v1335
  %v1628 = vunpack.c.l.b16 %v1336
  %v1629 = vunpack.c.h.b16 %v1336
  %v1630 = vunpack.c.l.b16 %v1337
  %v1631 = vunpack.c.h.b16 %v1337
  %v1632 = vunpack.c.l.b16 %v1338
  %v1633 = vunpack.c.h.b16 %v1338
  %v1634 = vunpack.c.l.b16 %v1339
  %v1635 = vunpack.c.h.b16 %v1339
  %v1636 = vunpack.c.l.b16 %v1340
  %v1637 = vunpack.c.h.b16 %v1340
  %v1638 = vunpack.c.l.b16 %v1341
  %v1639 = vunpack.c.h.b16 %v1341
  %v1640 = vunpack.c.l.b16 %v1342
  %v1641 = vunpack.c.h.b16 %v1342
  %v1642 = vunpack.c.l.b16 %v1343
  %v1643 = vunpack.c.h.b16 %v1343
  %v1644 = vunpack.c.l.b16 %v1344
  %v1645 = vunpack.c.h.b16 %v1344
  %v1646 = vunpack.c.l.b16 %v1345
  %v1647 = vunpack.c.h.b16 %v1345
  %v1648 = vunpack.c.l.b16 %v1346
  %v1649 = vunpack.c.h.b16 %v1346
  %v1650 = vunpack.c.l.b16 %v1347
  %v1651 = vunpack.c.h.b16 %v1347
  %v1652 = vunpack.c.l.b16 %v1348
  %v1653 = vunpack.c.h.b16 %v1348
  %v1654 = vunpack.c.l.b16 %v1349
  %v1655 = vunpack.c.h.b16 %v1349
  %v1656 = vunpack.c.l.b16 %v1350
  %v1657 = vunpack.c.h.b16 %v1350
  %v1658 = vunpack.c.l.b16 %v1351
  %v1659 = vunpack.c.h.b16 %v1351
  %v1660 = vunpack.c.l.b16 %v1352
  %v1661 = vunpack.c.h.b16 %v1352
  %v1662 = vunpack.c.l.b16 %v1353
  %v1663 = vunpack.c.h.b16 %v1353
  %v1664 = vunpack.c.l.b16 %v1354
  %v1665 = vunpack.c.h.b16 %v1354
  %v1666 = vunpack.c.l.b16 %v1355
  %v1667 = vunpack.c.h.b16 %v1355
  %v1668 = vunpack.c.l.b16 %v1356
  %v1669 = vunpack.c.h.b16 %v1356
  %v1670 = vunpack.c.l.b16 %v1357
  %v1671 = vunpack.c.h.b16 %v1357
  %v1672 = vunpack.c.l.b16 %v1358
  %v1673 = vunpack.c.h.b16 %v1358
  %v1674 = vunpack.c.l.b16 %v1359
  %v1675 = vunpack.c.h.b16 %v1359
  %v1676 = vunpack.c.l.b16 %v1360
  %v1677 = vunpack.c.h.b16 %v1360
  %v1678 = vunpack.c.l.b16 %v1361
  %v1679 = vunpack.c.h.b16 %v1361
  %v1680 = vunpack.c.l.b16 %v1362
  %v1681 = vunpack.c.h.b16 %v1362
  %v1682 = vunpack.c.l.b16 %v1363
  %v1683 = vunpack.c.h.b16 %v1363
  %v1684 = vunpack.c.l.b16 %v1364
  %v1685 = vunpack.c.h.b16 %v1364
  %v1686 = vunpack.c.l.b16 %v1365
  %v1687 = vunpack.c.h.b16 %v1365
  %v1688 = vunpack.c.l.b16 %v1366
  %v1689 = vunpack.c.h.b16 %v1366
  %v1690 = vunpack.c.l.b16 %v1367
  %v1691 = vunpack.c.h.b16 %v1367
  %v1692 = vunpack.c.l.b16 %v1368
  %v1693 = vunpack.c.h.b16 %v1368
  %v1694 = vunpack.c.l.b16 %v1369
  %v1695 = vunpack.c.h.b16 %v1369
  %v1696 = vunpack.c.l.b16 %v1370
  %v1697 = vunpack.c.h.b16 %v1370
  %v1698 = vunpack.c.l.b16 %v1371
  %v1699 = vunpack.c.h.b16 %v1371
  %v1700 = vunpack.c.l.b16 %v1372
  %v1701 = vunpack.c.h.b16 %v1372
  %v1702 = vunpack.c.l.b16 %v1373
  %v1703 = vunpack.c.h.b16 %v1373
  %v1704 = vunpack.c.l.b16 %v1374
  %v1705 = vunpack.c.h.b16 %v1374
  %v1706 = vunpack.c.l.b16 %v1375
  %v1707 = vunpack.c.h.b16 %v1375
  %v1708 = vunpack.c.l.b16 %v1376
  %v1709 = vunpack.c.h.b16 %v1376
  %v1710 = vunpack.c.l.b16 %v1377
  %v1711 = vunpack.c.h.b16 %v1377
  %v1712 = vunpack.c.l.b16 %v1378
  %v1713 = vunpack.c.h.b16 %v1378
  %v1714 = vunpack.c.l.b16 %v1379
  %v1715 = vunpack.c.h.b16 %v1379
  %v1716 = vunpack.c.l.b16 %v1380
  %v1717 = vunpack.c.h.b16 %v1380
  %v1718 = vunpack.c.l.b16 %v1381
  %v1719 = vunpack.c.h.b16 %v1381
  %v1720 = vunpack.c.l.b16 %v1382
  %v1721 = vunpack.c.h.b16 %v1382
  %v1722 = vunpack.c.l.b16 %v1383
  %v1723 = vunpack.c.h.b16 %v1383
  %v1724 = vunpack.c.l.b16 %v1384
  %v1725 = vunpack.c.h.b16 %v1384
  %v1726 = vunpack.c.l.b16 %v1385
  %v1727 = vunpack.c.h.b16 %v1385
  %v1728 = vunpack.c.l.b16 %v1386
  %v1729 = vunpack.c.h.b16 %v1386
  %v1730 = vunpack.c.l.b16 %v1387
  %v1731 = vunpack.c.h.b16 %v1387
  %v1732 = vunpack.c.l.b16 %v1388
  %v1733 = vunpack.c.h.b16 %v1388
  %v1734 = vunpack.c.l.b16 %v1389
  %v1735 = vunpack.c.h.b16 %v1389
  %v1736 = vunpack.c.l.b16 %v1390
  %v1737 = vunpack.c.h.b16 %v1390
  %v1738 = vunpack.c.l.b16 %v1391
  %v1739 = vunpack.c.h.b16 %v1391
  %v1740 = vunpack.c.l.b16 %v1392
  %v1741 = vunpack.c.h.b16 %v1392
  %v1742 = vunpack.c.l.b16 %v1393
  %v1743 = vunpack.c.h.b16 %v1393
  %v1744 = vunpack.c.l.b16 %v1394
  %v1745 = vunpack.c.h.b16 %v1394
  %v1746 = vunpack.c.l.b16 %v1395
  %v1747 = vunpack.c.h.b16 %v1395
  %v1748 = vunpack.c.l.b16 %v1396
  %v1749 = vunpack.c.h.b16 %v1396
  %v1750 = vunpack.c.l.b16 %v1397
  %v1751 = vunpack.c.h.b16 %v1397
  %v1752 = vunpack.c.l.b16 %v1398
  %v1753 = vunpack.c.h.b16 %v1398
  %v1754 = vunpack.c.l.b16 %v1399
  %v1755 = vunpack.c.h.b16 %v1399
  %v1756 = vunpack.c.l.b16 %v1400
  %v1757 = vunpack.c.h.b16 %v1400
  %v1758 = vunpack.c.l.b16 %v1401
  %v1759 = vunpack.c.h.b16 %v1401
  %v1760 = vunpack.c.l.b16 %v1402
  %v1761 = vunpack.c.h.b16 %v1402
  %v1762 = vunpack.c.l.b16 %v1403
  %v1763 = vunpack.c.h.b16 %v1403
  %v1764 = vunpack.c.l.b16 %v1404
  %v1765 = vunpack.c.h.b16 %v1404
  %v1766 = vunpack.c.l.b16 %v1405
  %v1767 = vunpack.c.h.b16 %v1405
  %v1768 = vunpack.c.l.b16 %v1406
  %v1769 = vunpack.c.h.b16 %v1406
  %v1770 = vunpack.c.l.b16 %v1407
  %v1771 = vunpack.c.h.b16 %v1407
  %v1772 = vunpack.c.l.b16 %v1408
  %v1773 = vunpack.c.h.b16 %v1408
  %v1774 = vunpack.c.l.b16 %v1409
  %v1775 = vunpack.c.h.b16 %v1409
  %v1776 = vunpack.c.l.b16 %v1410
  %v1777 = vunpack.c.h.b16 %v1410
  %v1778 = vunpack.c.l.b16 %v1411
  %v1779 = vunpack.c.h.b16 %v1411
  %v1780 = vunpack.c.l.b16 %v1412
  %v1781 = vunpack.c.h.b16 %v1412
  %v1782 = vunpack.c.l.b16 %v1413
  %v1783 = vunpack.c.h.b16 %v1413
  %v1784 = vunpack.c.l.b16 %v1414
  %v1785 = vunpack.c.h.b16 %v1414
  %v1786 = vunpack.c.l.b16 %v1415
  %v1787 = vunpack.c.h.b16 %v1415
  %v1788 = vunpack.c.l.b16 %v1416
  %v1789 = vunpack.c.h.b16 %v1416
  %v1790 = vunpack.c.l.b16 %v1417
  %v1791 = vunpack.c.h.b16 %v1417
  %v1792 = vunpack.c.l.b16 %v1418
  %v1793 = vunpack.c.h.b16 %v1418
  %v1794 = vunpack.c.l.b16 %v1419
  %v1795 = vunpack.c.h.b16 %v1419
  %v1796 = vunpack.c.l.b16 %v1420
  %v1797 = vunpack.c.h.b16 %v1420
  %v1798 = vunpack.c.l.b16 %v1421
  %v1799 = vunpack.c.h.b16 %v1421
  %v1800 = vunpack.c.l.b16 %v1422
  %v1801 = vunpack.c.h.b16 %v1422
  %v1802 = vunpack.c.l.b16 %v1423
  %v1803 = vunpack.c.h.b16 %v1423
  %v1804 = vunpack.c.l.b16 %v1424
  %v1805 = vunpack.c.h.b16 %v1424
  %v1806 = vunpack.c.l.b16 %v1425
  %v1807 = vunpack.c.h.b16 %v1425
  %v1808 = vunpack.c.l.b16 %v1426
  %v1809 = vunpack.c.h.b16 %v1426
  %v1810 = vunpack.c.l.b16 %v1427
  %v1811 = vunpack.c.h.b16 %v1427
  %v1812 = vunpack.c.l.b16 %v1428
  %v1813 = vunpack.c.h.b16 %v1428
  %v1814 = vunpack.c.l.b16 %v1429
  %v1815 = vunpack.c.h.b16 %v1429
  %v1816 = vunpack.c.l.b16 %v1430
  %v1817 = vunpack.c.h.b16 %v1430
  %v1818 = vunpack.c.l.b16 %v1431
  %v1819 = vunpack.c.h.b16 %v1431
  %v1820 = vunpack.c.l.b16 %v1432
  %v1821 = vunpack.c.h.b16 %v1432
  %v1822 = vunpack.c.l.b16 %v1433
  %v1823 = vunpack.c.h.b16 %v1433
  %v1824 = vunpack.c.l.b16 %v1434
  %v1825 = vunpack.c.h.b16 %v1434
  %v1826 = vunpack.c.l.b16 %v1435
  %v1827 = vunpack.c.h.b16 %v1435
  %v1828 = vunpack.c.l.b16 %v1436
  %v1829 = vunpack.c.h.b16 %v1436
  %v1830 = vunpack.c.l.b16 %v1437
  %v1831 = vunpack.c.h.b16 %v1437
  %v1832 = vunpack.c.l.b16 %v1438
  %v1833 = vunpack.c.h.b16 %v1438
  %v1834 = vunpack.c.l.b16 %v1439
  %v1835 = vunpack.c.h.b16 %v1439
  %v1836 = vunpack.c.l.b16 %v1440
  %v1837 = vunpack.c.h.b16 %v1440
  %v1838 = vunpack.c.l.b16 %v1441
  %v1839 = vunpack.c.h.b16 %v1441
  %v1840 = vunpack.c.l.b16 %v1442
  %v1841 = vunpack.c.h.b16 %v1442
  %v1842 = vunpack.c.l.b16 %v1443
  %v1843 = vunpack.c.h.b16 %v1443
  %v1844 = vunpack.c.l.b16 %v1444
  %v1845 = vunpack.c.h.b16 %v1444
  %v1846 = vunpack.c.l.b16 %v1445
  %v1847 = vunpack.c.h.b16 %v1445
  %v1848 = vunpack.c.l.b16 %v1446
  %v1849 = vunpack.c.h.b16 %v1446
  %v1850 = vunpack.c.l.b16 %v1447
  %v1851 = vunpack.c.h.b16 %v1447
  %v1852 = vunpack.c.l.b16 %v1448
  %v1853 = vunpack.c.h.b16 %v1448
  %v1854 = vunpack.c.l.b16 %v1449
  %v1855 = vunpack.c.h.b16 %v1449
  %v1856 = vpack.c.b16 %v1604, %v1600
  %v1857 = vpack.c.b16 %v1605, %v1601
  %v1858 = vpack.c.b16 %v1606, %v1602
  %v1859 = vpack.c.b16 %v1607, %v1603
  %v1860 = vpack.c.b16 %v1612, %v1608
  %v1861 = vpack.c.b16 %v1613, %v1609
  %v1862 = vpack.c.b16 %v1614, %v1610
  %v1863 = vpack.c.b16 %v1615, %v1611
  %v1864 = vpack.c.b16 %v1620, %v1616
  %v1865 = vpack.c.b16 %v1621, %v1617
  %v1866 = vpack.c.b16 %v1622, %v1618
  %v1867 = vpack.c.b16 %v1623, %v1619
  %v1868 = vpack.c.b16 %v1628, %v1624
  %v1869 = vpack.c.b16 %v1629, %v1625
  %v1870 = vpack.c.b16 %v1630, %v1626
  %v1871 = vpack.c.b16 %v1631, %v1627
  %v1872 = vpack.c.b16 %v1636, %v1632
  %v1873 = vpack.c.b16 %v1637, %v1633
  %v1874 = vpack.c.b16 %v1638, %v1634
  %v1875 = vpack.c.b16 %v1639, %v1635
  %v1876 = vpack.c.b16 %v1644, %v1640
  %v1877 = vpack.c.b16 %v1645, %v1641
  %v1878 = vpack.c.b16 %v1646, %v1642
  %v1879 = vpack.c.b16 %v1647, %v1643
  %v1880 = vpack.c.b16 %v1652, %v1648
  %v1881 = vpack.c.b16 %v1653, %v1649
  %v1882 = vpack.c.b16 %v1654, %v1650
  %v1883 = vpack.c.b16 %v1655, %v1651
  %v1884 = vpack.c.b16 %v1660, %v1656
  %v1885 = vpack.c.b16 %v1661, %v1657
  %v1886 = vpack.c.b16 %v1662, %v1658
  %v1887 = vpack.c.b16 %v1663, %v1659
  %v1888 = vpack.c.b16 %v1668, %v1664
  %v1889 = vpack.c.b16 %v1669, %v1665
  %v1890 = vpack.c.b16 %v1670, %v1666
  %v1891 = vpack.c.b16 %v1671, %v1667
  %v1892 = vpack.c.b16 %v1676, %v1672
  %v1893 = vpack.c.b16 %v1677, %v1673
  %v1894 = vpack.c.b16 %v1678, %v1674
  %v1895 = vpack.c.b16 %v1679, %v1675
  %v1896 = vpack.c.b16 %v1684, %v1680
  %v1897 = vpack.c.b16 %v1685, %v1681
  %v1898 = vpack.c.b16 %v1686, %v1682
  %v1899 = vpack.c.b16 %v1687, %v1683
  %v1900 = vpack.c.b16 %v1692, %v1688
  %v1901 = vpack.c.b16 %v1693, %v1689
  %v1902 = vpack.c.b16 %v1694, %v1690
  %v1903 = vpack.c.b16 %v1695, %v1691
  %v1904 = vpack.c.b16 %v1700, %v1696
  %v1905 = vpack.c.b16 %v1701, %v1697
  %v1906 = vpack.c.b16 %v1702, %v1698
  %v1907 = vpack.c.b16 %v1703, %v1699
  %v1908 = vpack.c.b16 %v1708, %v1704
  %v1909 = vpack.c.b16 %v1709, %v1705
  %v1910 = vpack.c.b16 %v1710, %v1706
  %v1911 = vpack.c.b16 %v1711, %v1707
  %v1912 = vpack.c.b16 %v1716, %v1712
  %v1913 = vpack.c.b16 %v1717, %v1713
  %v1914 = vpack.c.b16 %v1718, %v1714
  %v1915 = vpack.c.b16 %v1719, %v1715
  %v1916 = vpack.c.b16 %v1724, %v1720
  %v1917 = vpack.c.b16 %v1725, %v1721
  %v1918 = vpack.c.b16 %v1726, %v1722
  %v1919 = vpack.c.b16 %v1727, %v1723
  %v1920 = vpack.c.b16 %v1732, %v1728
  %v1921 = vpack.c.b16 %v1733, %v1729
  %v1922 = vpack.c.b16 %v1734, %v1730
  %v1923 = vpack.c.b16 %v1735, %v1731
  %v1924 = vpack.c.b16 %v1740, %v1736
  %v1925 = vpack.c.b16 %v1741, %v1737
  %v1926 = vpack.c.b16 %v1742, %v1738
  %v1927 = vpack.c.b16 %v1743, %v1739
  %v1928 = vpack.c.b16 %v1748, %v1744
  %v1929 = vpack.c.b16 %v1749, %v1745
  %v1930 = vpack.c.b16 %v1750, %v1746
  %v1931 = vpack.c.b16 %v1751, %v1747
  %v1932 = vpack.c.b16 %v1756, %v1752
  %v1933 = vpack.c.b16 %v1757, %v1753
  %v1934 = vpack.c.b16 %v1758, %v1754
  %v1935 = vpack.c.b16 %v1759, %v1755
  %v1936 = vpack.c.b16 %v1764, %v1760
  %v1937 = vpack.c.b16 %v1765, %v1761
  %v1938 = vpack.c.b16 %v1766, %v1762
  %v1939 = vpack.c.b16 %v1767, %v1763
  %v1940 = vpack.c.b16 %v1772, %v1768
  %v1941 = vpack.c.b16 %v1773, %v1769
  %v1942 = vpack.c.b16 %v1774, %v1770
  %v1943 = vpack.c.b16 %v1775, %v1771
  %v1944 = vpack.c.b16 %v1780, %v1776
  %v1945 = vpack.c.b16 %v1781, %v1777
  %v1946 = vpack.c.b16 %v1782, %v1778
  %v1947 = vpack.c.b16 %v1783, %v1779
  %v1948 = vpack.c.b16 %v1788, %v1784
  %v1949 = vpack.c.b16 %v1789, %v1785
  %v1950 = vpack.c.b16 %v1790, %v1786
  %v1951 = vpack.c.b16 %v1791, %v1787
  %v1952 = vpack.c.b16 %v1796, %v1792
  %v1953 = vpack.c.b16 %v1797, %v1793
  %v1954 = vpack.c.b16 %v1798, %v1794
  %v1955 = vpack.c.b16 %v1799, %v1795
  %v1956 = vpack.c.b16 %v1804, %v1800
  %v1957 = vpack.c.b16 %v1805, %v1801
  %v1958 = vpack.c.b16 %v1806, %v1802
  %v1959 = vpack.c.b16 %v1807, %v1803
  %v1960 = vpack.c.b16 %v1812, %v1808
  %v1961 = vpack.c.b16 %v1813, %v1809
  %v1962 = vpack.c.b16 %v1814, %v1810
  %v1963 = vpack.c.b16 %v1815, %v1811
  %v1964 = vpack.c.b16 %v1820, %v1816
  %v1965 = vpack.c.b16 %v1821, %v1817
  %v1966 = vpack.c.b16 %v1822, %v1818
  %v1967 = vpack.c.b16 %v1823, %v1819
  %v1968 = vpack.c.b16 %v1828, %v1824
  %v1969 = vpack.c.b16 %v1829, %v1825
  %v1970 = vpack.c.b16 %v1830, %v1826
  %v1971 = vpack.c.b16 %v1831, %v1827
  %v1972 = vpack.c.b16 %v1836, %v1832
  %v1973 = vpack.c.b16 %v1837, %v1833
  %v1974 = vpack.c.b16 %v1838, %v1834
  %v1975 = vpack.c.b16 %v1839, %v1835
  %v1976 = vpack.c.b16 %v1844, %v1840
  %v1977 = vpack.c.b16 %v1845, %v1841
  %v1978 = vpack.c.b16 %v1846, %v1842
  %v1979 = vpack.c.b16 %v1847, %v1843
  %v1980 = vpack.c.b16 %v1852, %v1848
  %v1981 = vpack.c.b16 %v1853, %v1849
  %v1982 = vpack.c.b16 %v1854, %v1850
  %v1983 = vpack.c.b16 %v1855, %v1851
  %2112 = vmatprep.subr.bf16.mxu0 %v1857
  %2113 = vmatpush1.bf16.msra.mxu0 %v1856
  %2114 = vmatprep.subr.bf16.mxu0 %v1861
  %2115 = vmatpush1.bf16.msra.mxu0 %v1860
  %2116 = vmatprep.subr.bf16.mxu0 %v1865
  %2117 = vmatpush1.bf16.msra.mxu0 %v1864
  %2118 = vmatprep.subr.bf16.mxu0 %v1869
  %2119 = vmatpush1.bf16.msra.mxu0 %v1868
  %2120 = vmatprep.subr.bf16.mxu0 %v1873
  %2121 = vmatpush1.bf16.msra.mxu0 %v1872
  %2122 = vmatprep.subr.bf16.mxu0 %v1877
  %2123 = vmatpush1.bf16.msra.mxu0 %v1876
  %2124 = vmatprep.subr.bf16.mxu0 %v1881
  %2125 = vmatpush1.bf16.msra.mxu0 %v1880
  %2126 = vmatprep.subr.bf16.mxu0 %v1885
  %2127 = vmatpush1.bf16.msra.mxu0 %v1884
  %2128 = vmatprep.subr.bf16.mxu0 %v1889
  %2129 = vmatpush1.bf16.msra.mxu0 %v1888
  %2130 = vmatprep.subr.bf16.mxu0 %v1893
  %2131 = vmatpush1.bf16.msra.mxu0 %v1892
  %2132 = vmatprep.subr.bf16.mxu0 %v1897
  %2133 = vmatpush1.bf16.msra.mxu0 %v1896
  %2134 = vmatprep.subr.bf16.mxu0 %v1901
  %2135 = vmatpush1.bf16.msra.mxu0 %v1900
  %2136 = vmatprep.subr.bf16.mxu0 %v1905
  %2137 = vmatpush1.bf16.msra.mxu0 %v1904
  %2138 = vmatprep.subr.bf16.mxu0 %v1909
  %2139 = vmatpush1.bf16.msra.mxu0 %v1908
  %2140 = vmatprep.subr.bf16.mxu0 %v1913
  %2141 = vmatpush1.bf16.msra.mxu0 %v1912
  %2142 = vmatprep.subr.bf16.mxu0 %v1917
  %2143 = vmatpush1.bf16.msra.mxu0 %v1916
  %2144 = vmatprep.mubr.bf16.mxu0 %v1319
  %2145 = vmatmul.mubr.bf16.gmra.mrb[0].mxu0 %v1318
  %v2146 = vpop.f32.mrb[0].mxu0
  %v2147 = vadd.f32 %v1455, %v2146
  %v2148 = vpop.f32.mrb[0].mxu0
  %v2149 = vadd.f32 %v1459, %v2148
  %v2150 = vpop.f32.mrb[0].mxu0
  %v2151 = vadd.f32 %v1455, %v2150
  %v2152 = vpop.f32.mrb[0].mxu0
  %v2153 = vadd.f32 %v1459, %v2152
  %2154 = vdwg.mxu0
  %2155 = vmatprep.subr.bf16.mxu0 %v1921
  %2156 = vmatpush1.bf16.msra.mxu0 %v1920
  %2157 = vmatprep.subr.bf16.mxu0 %v1925
  %2158 = vmatpush1.bf16.msra.mxu0 %v1924
  %2159 = vmatprep.subr.bf16.mxu0 %v1929
  %2160 = vmatpush1.bf16.msra.mxu0 %v1928
  %2161 = vmatprep.subr.bf16.mxu0 %v1933
  %2162 = vmatpush1.bf16.msra.mxu0 %v1932
  %2163 = vmatprep.subr.bf16.mxu0 %v1937
  %2164 = vmatpush1.bf16.msra.mxu0 %v1936
  %2165 = vmatprep.subr.bf16.mxu0 %v1941
  %2166 = vmatpush1.bf16.msra.mxu0 %v1940
  %2167 = vmatprep.subr.bf16.mxu0 %v1945
  %2168 = vmatpush1.bf16.msra.mxu0 %v1944
  %2169 = vmatprep.subr.bf16.mxu0 %v1949
  %2170 = vmatpush1.bf16.msra.mxu0 %v1948
  %2171 = vmatprep.subr.bf16.mxu0 %v1953
  %2172 = vmatpush1.bf16.msra.mxu0 %v1952
  %2173 = vmatprep.subr.bf16.mxu0 %v1957
  %2174 = vmatpush1.bf16.msra.mxu0 %v1956
  %2175 = vmatprep.subr.bf16.mxu0 %v1961
  %2176 = vmatpush1.bf16.msra.mxu0 %v1960
  %2177 = vmatprep.subr.bf16.mxu0 %v1965
  %2178 = vmatpush1.bf16.msra.mxu0 %v1964
  %2179 = vmatprep.subr.bf16.mxu0 %v1969
  %2180 = vmatpush1.bf16.msra.mxu0 %v1968
  %2181 = vmatprep.subr.bf16.mxu0 %v1973
  %2182 = vmatpush1.bf16.msra.mxu0 %v1972
  %2183 = vmatprep.subr.bf16.mxu0 %v1977
  %2184 = vmatpush1.bf16.msra.mxu0 %v1976
  %2185 = vmatprep.subr.bf16.mxu0 %v1981
  %2186 = vmatpush1.bf16.msra.mxu0 %v1980
  %2187 = vmatprep.mubr.bf16.mxu0 %v1321
  %2188 = vmatmul.mubr.bf16.gmra.mrb[0].mxu0 %v1320
  %v2189 = vpop.f32.mrb[0].mxu0
  %v2190 = vadd.f32 %v2147, %v2189
  %v2191 = vpop.f32.mrb[0].mxu0
  %v2192 = vadd.f32 %v2149, %v2191
  %v2193 = vpop.f32.mrb[0].mxu0
  %v2194 = vadd.f32 %v2151, %v2193
  %v2195 = vpop.f32.mrb[0].mxu0
  %v2196 = vadd.f32 %v2153, %v2195
  %2197 = vdwg.mxu0
  %2198 = vmatprep.subr.bf16.mxu0 %v1859
  %2199 = vmatpush1.bf16.msra.mxu0 %v1858
  %2200 = vmatprep.subr.bf16.mxu0 %v1863
  %2201 = vmatpush1.bf16.msra.mxu0 %v1862
  %2202 = vmatprep.subr.bf16.mxu0 %v1867
  %2203 = vmatpush1.bf16.msra.mxu0 %v1866
  %2204 = vmatprep.subr.bf16.mxu0 %v1871
  %2205 = vmatpush1.bf16.msra.mxu0 %v1870
  %2206 = vmatprep.subr.bf16.mxu0 %v1875
  %2207 = vmatpush1.bf16.msra.mxu0 %v1874
  %2208 = vmatprep.subr.bf16.mxu0 %v1879
  %2209 = vmatpush1.bf16.msra.mxu0 %v1878
  %2210 = vmatprep.subr.bf16.mxu0 %v1883
  %2211 = vmatpush1.bf16.msra.mxu0 %v1882
  %2212 = vmatprep.subr.bf16.mxu0 %v1887
  %2213 = vmatpush1.bf16.msra.mxu0 %v1886
  %2214 = vmatprep.subr.bf16.mxu0 %v1891
  %2215 = vmatpush1.bf16.msra.mxu0 %v1890
  %2216 = vmatprep.subr.bf16.mxu0 %v1895
  %2217 = vmatpush1.bf16.msra.mxu0 %v1894
  %2218 = vmatprep.subr.bf16.mxu0 %v1899
  %2219 = vmatpush1.bf16.msra.mxu0 %v1898
  %2220 = vmatprep.subr.bf16.mxu0 %v1903
  %2221 = vmatpush1.bf16.msra.mxu0 %v1902
  %2222 = vmatprep.subr.bf16.mxu0 %v1907
  %2223 = vmatpush1.bf16.msra.mxu0 %v1906
  %2224 = vmatprep.subr.bf16.mxu0 %v1911
  %2225 = vmatpush1.bf16.msra.mxu0 %v1910
  %2226 = vmatprep.subr.bf16.mxu0 %v1915
  %2227 = vmatpush1.bf16.msra.mxu0 %v1914
  %2228 = vmatprep.subr.bf16.mxu0 %v1919
  %2229 = vmatpush1.bf16.msra.mxu0 %v1918
  %2230 = vmatprep.mubr.bf16.mxu0 %v1319
  %2231 = vmatmul.mubr.bf16.gmra.mrb[0].mxu0 %v1318
  %v2232 = vpop.f32.mrb[0].mxu0
  %v2233 = vadd.f32 %v1463, %v2232
  %v2234 = vpop.f32.mrb[0].mxu0
  %v2235 = vadd.f32 %v1467, %v2234
  %v2236 = vpop.f32.mrb[0].mxu0
  %v2237 = vadd.f32 %v1463, %v2236
  %v2238 = vpop.f32.mrb[0].mxu0
  %v2239 = vadd.f32 %v1467, %v2238
  %2240 = vdwg.mxu0
  %2241 = vmatprep.subr.bf16.mxu0 %v1923
  %2242 = vmatpush1.bf16.msra.mxu0 %v1922
  %2243 = vmatprep.subr.bf16.mxu0 %v1927
  %2244 = vmatpush1.bf16.msra.mxu0 %v1926
  %2245 = vmatprep.subr.bf16.mxu0 %v1931
  %2246 = vmatpush1.bf16.msra.mxu0 %v1930
  %2247 = vmatprep.subr.bf16.mxu0 %v1935
  %2248 = vmatpush1.bf16.msra.mxu0 %v1934
  %2249 = vmatprep.subr.bf16.mxu0 %v1939
  %2250 = vmatpush1.bf16.msra.mxu0 %v1938
  %2251 = vmatprep.subr.bf16.mxu0 %v1943
  %2252 = vmatpush1.bf16.msra.mxu0 %v1942
  %2253 = vmatprep.subr.bf16.mxu0 %v1947
  %2254 = vmatpush1.bf16.msra.mxu0 %v1946
  %2255 = vmatprep.subr.bf16.mxu0 %v1951
  %2256 = vmatpush1.bf16.msra.mxu0 %v1950
  %2257 = vmatprep.subr.bf16.mxu0 %v1955
  %2258 = vmatpush1.bf16.msra.mxu0 %v1954
  %2259 = vmatprep.subr.bf16.mxu0 %v1959
  %2260 = vmatpush1.bf16.msra.mxu0 %v1958
  %2261 = vmatprep.subr.bf16.mxu0 %v1963
  %2262 = vmatpush1.bf16.msra.mxu0 %v1962
  %2263 = vmatprep.subr.bf16.mxu0 %v1967
  %2264 = vmatpush1.bf16.msra.mxu0 %v1966
  %2265 = vmatprep.subr.bf16.mxu0 %v1971
  %2266 = vmatpush1.bf16.msra.mxu0 %v1970
  %2267 = vmatprep.subr.bf16.mxu0 %v1975
  %2268 = vmatpush1.bf16.msra.mxu0 %v1974
  %2269 = vmatprep.subr.bf16.mxu0 %v1979
  %2270 = vmatpush1.bf16.msra.mxu0 %v1978
  %2271 = vmatprep.subr.bf16.mxu0 %v1983
  %2272 = vmatpush1.bf16.msra.mxu0 %v1982
  %2273 = vmatprep.mubr.bf16.mxu0 %v1321
  %2274 = vmatmul.mubr.bf16.gmra.mrb[0].mxu0 %v1320
  %v2275 = vpop.f32.mrb[0].mxu0
  %v2276 = vadd.f32 %v2233, %v2275
  %v2277 = vpop.f32.mrb[0].mxu0
  %v2278 = vadd.f32 %v2235, %v2277
  %v2279 = vpop.f32.mrb[0].mxu0
  %v2280 = vadd.f32 %v2237, %v2279
  %v2281 = vpop.f32.mrb[0].mxu0
  %v2282 = vadd.f32 %v2239, %v2281
  %2283 = vdwg.mxu0
  %v2284 = vmax.f32 %v2190, 0.0
  %v2285 = vmax.f32 %v2192, 0.0
  %v2286 = vmax.f32 %v2276, 0.0
  %v2287 = vmax.f32 %v2278, 0.0
  %v2288 = vmax.f32 %v2194, 0.0
  %v2289 = vmax.f32 %v2196, 0.0
  %v2290 = vmax.f32 %v2280, 0.0
  %v2291 = vmax.f32 %v2282, 0.0
  %v2292 = vpack.c.bf16 %v2288, %v2284
  %v2293 = vpack.c.bf16 %v2289, %v2285
  %v2294 = vpack.c.bf16 %v2290, %v2286
  %v2295 = vpack.c.bf16 %v2291, %v2287
  %v2296 = vld [vmem:[%s7] sm:$0xf]
  %v2297 = vld [vmem:[%s7 + $0x4] sm:$0xf]
  %v2298 = vld [vmem:[%s7 + $0x8] sm:$0xf]
  %v2299 = vld [vmem:[%s7 + $0xc] sm:$0xf]
  %v2300 = vld [vmem:[%s7 + $0x10] sm:$0xf]
  %v2301 = vld [vmem:[%s7 + $0x14] sm:$0xf]
  %v2302 = vld [vmem:[%s7 + $0x18] sm:$0xf]
  %v2303 = vld [vmem:[%s7 + $0x1c] sm:$0xf]
  %v2304 = vld [vmem:[%s7 + $0x20] sm:$0xf]
  %v2305 = vld [vmem:[%s7 + $0x24] sm:$0xf]
  %v2306 = vld [vmem:[%s7 + $0x28] sm:$0xf]
  %v2307 = vld [vmem:[%s7 + $0x2c] sm:$0xf]
  %v2308 = vld [vmem:[%s7 + $0x30] sm:$0xf]
  %v2309 = vld [vmem:[%s7 + $0x34] sm:$0xf]
  %v2310 = vld [vmem:[%s7 + $0x38] sm:$0xf]
  %v2311 = vld [vmem:[%s7 + $0x3c] sm:$0xf]
  %v2312 = vld [vmem:[%s7 + $0x40] sm:$0xf]
  %v2313 = vld [vmem:[%s7 + $0x44] sm:$0xf]
  %v2314 = vld [vmem:[%s7 + $0x48] sm:$0xf]
  %v2315 = vld [vmem:[%s7 + $0x4c] sm:$0xf]
  %v2316 = vld [vmem:[%s7 + $0x50] sm:$0xf]
  %v2317 = vld [vmem:[%s7 + $0x54] sm:$0xf]
  %v2318 = vld [vmem:[%s7 + $0x58] sm:$0xf]
  %v2319 = vld [vmem:[%s7 + $0x5c] sm:$0xf]
  %v2320 = vld [vmem:[%s7 + $0x60] sm:$0xf]
  %v2321 = vld [vmem:[%s7 + $0x64] sm:$0xf]
  %v2322 = vld [vmem:[%s7 + $0x68] sm:$0xf]
  %v2323 = vld [vmem:[%s7 + $0x6c] sm:$0xf]
  %v2324 = vld [vmem:[%s7 + $0x70] sm:$0xf]
  %v2325 = vld [vmem:[%s7 + $0x74] sm:$0xf]
  %v2326 = vld [vmem:[%s7 + $0x78] sm:$0xf]
  %v2327 = vld [vmem:[%s7 + $0x7c] sm:$0xf]
  %v2328 = vld [vmem:[%s7 + $0x80] sm:$0xf]
  %v2329 = vld [vmem:[%s7 + $0x84] sm:$0xf]
  %v2330 = vld [vmem:[%s7 + $0x88] sm:$0xf]
  %v2331 = vld [vmem:[%s7 + $0x8c] sm:$0xf]
  %v2332 = vld [vmem:[%s7 + $0x90] sm:$0xf]
  %v2333 = vld [vmem:[%s7 + $0x94] sm:$0xf]
  %v2334 = vld [vmem:[%s7 + $0x98] sm:$0xf]
  %v2335 = vld [vmem:[%s7 + $0x9c] sm:$0xf]
  %v2336 = vld [vmem:[%s7 + $0xa0] sm:$0xf]
  %v2337 = vld [vmem:[%s7 + $0xa4] sm:$0xf]
  %v2338 = vld [vmem:[%s7 + $0xa8] sm:$0xf]
  %v2339 = vld [vmem:[%s7 + $0xac] sm:$0xf]
  %v2340 = vld [vmem:[%s7 + $0xb0] sm:$0xf]
  %v2341 = vld [vmem:[%s7 + $0xb4] sm:$0xf]
  %v2342 = vld [vmem:[%s7 + $0xb8] sm:$0xf]
  %v2343 = vld [vmem:[%s7 + $0xbc] sm:$0xf]
  %v2344 = vld [vmem:[%s7 + $0xc0] sm:$0xf]
  %v2345 = vld [vmem:[%s7 + $0xc4] sm:$0xf]
  %v2346 = vld [vmem:[%s7 + $0xc8] sm:$0xf]
  %v2347 = vld [vmem:[%s7 + $0xcc] sm:$0xf]
  %v2348 = vld [vmem:[%s7 + $0xd0] sm:$0xf]
  %v2349 = vld [vmem:[%s7 + $0xd4] sm:$0xf]
  %v2350 = vld [vmem:[%s7 + $0xd8] sm:$0xf]
  %v2351 = vld [vmem:[%s7 + $0xdc] sm:$0xf]
  %v2352 = vld [vmem:[%s7 + $0xe0] sm:$0xf]
  %v2353 = vld [vmem:[%s7 + $0xe4] sm:$0xf]
  %v2354 = vld [vmem:[%s7 + $0xe8] sm:$0xf]
  %v2355 = vld [vmem:[%s7 + $0xec] sm:$0xf]
  %v2356 = vld [vmem:[%s7 + $0xf0] sm:$0xf]
  %v2357 = vld [vmem:[%s7 + $0xf4] sm:$0xf]
  %v2358 = vld [vmem:[%s7 + $0xf8] sm:$0xf]
  %v2359 = vld [vmem:[%s7 + $0xfc] sm:$0xf]
  %v2360 = vld [vmem:[%s8] sm:$0x1]
  %v2362 = vlaneseq
  %v2363 = vshrl.u32 %v2362, 7
  %v2364 = vsub.s32 0, %v2363
  %v2365 = vrot.slane %v2360, %v2364
  %v2431 = vunpack.c.l.b16 %v2296
  %v2432 = vunpack.c.l.b16 %v2297
  %v2433 = vunpack.c.l.b16 %v2298
  %v2434 = vunpack.c.l.b16 %v2299
  %v2435 = vunpack.c.l.b16 %v2300
  %v2436 = vunpack.c.l.b16 %v2301
  %v2437 = vunpack.c.l.b16 %v2302
  %v2438 = vunpack.c.l.b16 %v2303
  %v2439 = vunpack.c.l.b16 %v2304
  %v2440 = vunpack.c.l.b16 %v2305
  %v2441 = vunpack.c.l.b16 %v2306
  %v2442 = vunpack.c.l.b16 %v2307
  %v2443 = vunpack.c.l.b16 %v2308
  %v2444 = vunpack.c.l.b16 %v2309
  %v2445 = vunpack.c.l.b16 %v2310
  %v2446 = vunpack.c.l.b16 %v2311
  %v2447 = vunpack.c.l.b16 %v2312
  %v2448 = vunpack.c.l.b16 %v2313
  %v2449 = vunpack.c.l.b16 %v2314
  %v2450 = vunpack.c.l.b16 %v2315
  %v2451 = vunpack.c.l.b16 %v2316
  %v2452 = vunpack.c.l.b16 %v2317
  %v2453 = vunpack.c.l.b16 %v2318
  %v2454 = vunpack.c.l.b16 %v2319
  %v2455 = vunpack.c.l.b16 %v2320
  %v2456 = vunpack.c.l.b16 %v2321
  %v2457 = vunpack.c.l.b16 %v2322
  %v2458 = vunpack.c.l.b16 %v2323
  %v2459 = vunpack.c.l.b16 %v2324
  %v2460 = vunpack.c.l.b16 %v2325
  %v2461 = vunpack.c.l.b16 %v2326
  %v2462 = vunpack.c.l.b16 %v2327
  %v2463 = vunpack.c.l.b16 %v2328
  %v2464 = vunpack.c.l.b16 %v2329
  %v2465 = vunpack.c.l.b16 %v2330
  %v2466 = vunpack.c.l.b16 %v2331
  %v2467 = vunpack.c.l.b16 %v2332
  %v2468 = vunpack.c.l.b16 %v2333
  %v2469 = vunpack.c.l.b16 %v2334
  %v2470 = vunpack.c.l.b16 %v2335
  %v2471 = vunpack.c.l.b16 %v2336
  %v2472 = vunpack.c.l.b16 %v2337
  %v2473 = vunpack.c.l.b16 %v2338
  %v2474 = vunpack.c.l.b16 %v2339
  %v2475 = vunpack.c.l.b16 %v2340
  %v2476 = vunpack.c.l.b16 %v2341
  %v2477 = vunpack.c.l.b16 %v2342
  %v2478 = vunpack.c.l.b16 %v2343
  %v2479 = vunpack.c.l.b16 %v2344
  %v2480 = vunpack.c.l.b16 %v2345
  %v2481 = vunpack.c.l.b16 %v2346
  %v2482 = vunpack.c.l.b16 %v2347
  %v2483 = vunpack.c.l.b16 %v2348
  %v2484 = vunpack.c.l.b16 %v2349
  %v2485 = vunpack.c.l.b16 %v2350
  %v2486 = vunpack.c.l.b16 %v2351
  %v2487 = vunpack.c.l.b16 %v2352
  %v2488 = vunpack.c.l.b16 %v2353
  %v2489 = vunpack.c.l.b16 %v2354
  %v2490 = vunpack.c.l.b16 %v2355
  %v2491 = vunpack.c.l.b16 %v2356
  %v2492 = vunpack.c.l.b16 %v2357
  %v2493 = vunpack.c.l.b16 %v2358
  %v2494 = vunpack.c.l.b16 %v2359
  %v2495 = vpack.c.b16 %v2432, %v2431
  %v2496 = vpack.c.b16 %v2434, %v2433
  %v2497 = vpack.c.b16 %v2436, %v2435
  %v2498 = vpack.c.b16 %v2438, %v2437
  %v2499 = vpack.c.b16 %v2440, %v2439
  %v2500 = vpack.c.b16 %v2442, %v2441
  %v2501 = vpack.c.b16 %v2444, %v2443
  %v2502 = vpack.c.b16 %v2446, %v2445
  %v2503 = vpack.c.b16 %v2448, %v2447
  %v2504 = vpack.c.b16 %v2450, %v2449
  %v2505 = vpack.c.b16 %v2452, %v2451
  %v2506 = vpack.c.b16 %v2454, %v2453
  %v2507 = vpack.c.b16 %v2456, %v2455
  %v2508 = vpack.c.b16 %v2458, %v2457
  %v2509 = vpack.c.b16 %v2460, %v2459
  %v2510 = vpack.c.b16 %v2462, %v2461
  %v2511 = vpack.c.b16 %v2464, %v2463
  %v2512 = vpack.c.b16 %v2466, %v2465
  %v2513 = vpack.c.b16 %v2468, %v2467
  %v2514 = vpack.c.b16 %v2470, %v2469
  %v2515 = vpack.c.b16 %v2472, %v2471
  %v2516 = vpack.c.b16 %v2474, %v2473
  %v2517 = vpack.c.b16 %v2476, %v2475
  %v2518 = vpack.c.b16 %v2478, %v2477
  %v2519 = vpack.c.b16 %v2480, %v2479
  %v2520 = vpack.c.b16 %v2482, %v2481
  %v2521 = vpack.c.b16 %v2484, %v2483
  %v2522 = vpack.c.b16 %v2486, %v2485
  %v2523 = vpack.c.b16 %v2488, %v2487
  %v2524 = vpack.c.b16 %v2490, %v2489
  %v2525 = vpack.c.b16 %v2492, %v2491
  %v2526 = vpack.c.b16 %v2494, %v2493
  %2559 = vmatprep.subr.bf16.mxu0 0
  %2560 = vmatpush1.bf16.msra.mxu0 %v2495
  %2561 = vmatprep.subr.bf16.mxu0 0
  %2562 = vmatpush1.bf16.msra.mxu0 %v2496
  %2563 = vmatprep.subr.bf16.mxu0 0
  %2564 = vmatpush1.bf16.msra.mxu0 %v2497
  %2565 = vmatprep.subr.bf16.mxu0 0
  %2566 = vmatpush1.bf16.msra.mxu0 %v2498
  %2567 = vmatprep.subr.bf16.mxu0 0
  %2568 = vmatpush1.bf16.msra.mxu0 %v2499
  %2569 = vmatprep.subr.bf16.mxu0 0
  %2570 = vmatpush1.bf16.msra.mxu0 %v2500
  %2571 = vmatprep.subr.bf16.mxu0 0
  %2572 = vmatpush1.bf16.msra.mxu0 %v2501
  %2573 = vmatprep.subr.bf16.mxu0 0
  %2574 = vmatpush1.bf16.msra.mxu0 %v2502
  %2575 = vmatprep.subr.bf16.mxu0 0
  %2576 = vmatpush1.bf16.msra.mxu0 %v2503
  %2577 = vmatprep.subr.bf16.mxu0 0
  %2578 = vmatpush1.bf16.msra.mxu0 %v2504
  %2579 = vmatprep.subr.bf16.mxu0 0
  %2580 = vmatpush1.bf16.msra.mxu0 %v2505
  %2581 = vmatprep.subr.bf16.mxu0 0
  %2582 = vmatpush1.bf16.msra.mxu0 %v2506
  %2583 = vmatprep.subr.bf16.mxu0 0
  %2584 = vmatpush1.bf16.msra.mxu0 %v2507
  %2585 = vmatprep.subr.bf16.mxu0 0
  %2586 = vmatpush1.bf16.msra.mxu0 %v2508
  %2587 = vmatprep.subr.bf16.mxu0 0
  %2588 = vmatpush1.bf16.msra.mxu0 %v2509
  %2589 = vmatprep.subr.bf16.mxu0 0
  %2590 = vmatpush1.bf16.msra.mxu0 %v2510
  %2591 = vmatprep.mubr.bf16.mxu0 %v2293
  %2592 = vmatmul.mubr.bf16.gmra.mrb[0].mxu0 %v2292
  %v2593 = vpop.f32.mrb[0].mxu0
  %v2594 = vadd.f32 %v2365, %v2593
  %v2595 = vpop.f32.mrb[0].mxu0
  %v2596 = vpop.f32.mrb[0].mxu0
  %v2597 = vadd.f32 %v2365, %v2596
  %v2598 = vpop.f32.mrb[0].mxu0
  %2599 = vdwg.mxu0
  %2600 = vmatprep.subr.bf16.mxu0 0
  %2601 = vmatpush1.bf16.msra.mxu0 %v2511
  %2602 = vmatprep.subr.bf16.mxu0 0
  %2603 = vmatpush1.bf16.msra.mxu0 %v2512
  %2604 = vmatprep.subr.bf16.mxu0 0
  %2605 = vmatpush1.bf16.msra.mxu0 %v2513
  %2606 = vmatprep.subr.bf16.mxu0 0
  %2607 = vmatpush1.bf16.msra.mxu0 %v2514
  %2608 = vmatprep.subr.bf16.mxu0 0
  %2609 = vmatpush1.bf16.msra.mxu0 %v2515
  %2610 = vmatprep.subr.bf16.mxu0 0
  %2611 = vmatpush1.bf16.msra.mxu0 %v2516
  %2612 = vmatprep.subr.bf16.mxu0 0
  %2613 = vmatpush1.bf16.msra.mxu0 %v2517
  %2614 = vmatprep.subr.bf16.mxu0 0
  %2615 = vmatpush1.bf16.msra.mxu0 %v2518
  %2616 = vmatprep.subr.bf16.mxu0 0
  %2617 = vmatpush1.bf16.msra.mxu0 %v2519
  %2618 = vmatprep.subr.bf16.mxu0 0
  %2619 = vmatpush1.bf16.msra.mxu0 %v2520
  %2620 = vmatprep.subr.bf16.mxu0 0
  %2621 = vmatpush1.bf16.msra.mxu0 %v2521
  %2622 = vmatprep.subr.bf16.mxu0 0
  %2623 = vmatpush1.bf16.msra.mxu0 %v2522
  %2624 = vmatprep.subr.bf16.mxu0 0
  %2625 = vmatpush1.bf16.msra.mxu0 %v2523
  %2626 = vmatprep.subr.bf16.mxu0 0
  %2627 = vmatpush1.bf16.msra.mxu0 %v2524
  %2628 = vmatprep.subr.bf16.mxu0 0
  %2629 = vmatpush1.bf16.msra.mxu0 %v2525
  %2630 = vmatprep.subr.bf16.mxu0 0
  %2631 = vmatpush1.bf16.msra.mxu0 %v2526
  %2632 = vmatprep.mubr.bf16.mxu0 %v2295
  %2633 = vmatmul.mubr.bf16.gmra.mrb[0].mxu0 %v2294
  %v2634 = vpop.f32.mrb[0].mxu0
  %v2635 = vadd.f32 %v2594, %v2634
  %v2636 = vpop.f32.mrb[0].mxu0
  %v2637 = vpop.f32.mrb[0].mxu0
  %v2638 = vadd.f32 %v2597, %v2637
  %v2639 = vpop.f32.mrb[0].mxu0
  %2640 = vdwg.mxu0
  %2641 = vst [vmem:[%s9] sm:$0xff] %v2635
  %2642 = vst [vmem:[%s9 + $0x8] sm:$0xff] %v2638
  // Predicated region
  $region38: #{mlp_forward.1} parent=0 // pred_check
    _
  $region39: #{mlp_forward.1} parent=0 // pred_check_branch
    %2644 = sbr.rel (0) target = $region41
  $region40: #{mlp_forward.1} parent=0 // pred_region
    _
  $region41: #{mlp_forward.1} parent=0 // pred_fallthru
    _
  // Predicated region
  $region42: #{mlp_forward.1} parent=0 // pred_check
    _
  $region43: #{mlp_forward.1} parent=0 // pred_check_branch
    %2646 = sbr.rel (0) target = $region45
  $region44: #{mlp_forward.1} parent=0 // pred_region
    _
  $region45: #{mlp_forward.1} parent=0 // pred_fallthru
    _

</llo_original>
